<compile_context>
chip_gen: v7x
topology: tpu7x:2x2x1
jax: 0.10.0
libtpu: 0.0.40
codegen_flags: <defaults>
</compile_context>

<pallas_src>
import functools

import numpy as np
import jax
import jax.numpy as jnp
from jax import lax
from jax.experimental import pallas as pl
from jax.experimental.pallas import tpu as pltpu

LANES = 128


def _ceil8(n):
    return (n + 7) // 8 * 8


def slab_offsets(E, H, K):
    """Row offsets of each section inside the (rows, 128) constant slab (8-row aligned)."""
    off = {}
    r = 0
    off["win"] = r;        r = _ceil8(r + 2 * E)   # (2E, 8H) block-diag input weights
    off["whh"] = r;        r = _ceil8(r + 2 * H)   # (2H, 8H) block-diag hidden weights
    off["ball"] = r;       r = _ceil8(r + 1)       # (1, 8H)  fused biases
    off["wlin"] = r;       r = _ceil8(r + 2 * H)   # (2H, K)  linear weight (lanes>=K zero)
    off["blin"] = r;       r = _ceil8(r + 1)       # (1, K)   linear bias   (lanes>=K zero)
    off["transT"] = r;     r = _ceil8(r + K)       # (K, K)   transitions^T  [prev, next]
    off["trans"] = r;      r = _ceil8(r + K)       # (K, K)   transitions    [next, prev]
    off["tstop_col"] = r;  r = _ceil8(r + K)       # (K, 1)   transitions[STOP, :] as column
    off["rows"] = r
    return off


# ---------------------------------------------------------------------------
# Fused kernel: BiLSTM recurrence + linear + Viterbi DP + backtrace
# ---------------------------------------------------------------------------
def bilstm_crf_kernel(const_ref,                  # (R, 128)  packed constant slab (f32)
                      data_ref,                   # (T, 128)  packed per-call slab (f32)
                      out_f_ref,                  # out (T+1, 128) f32: feats rows + score row
                      out_i_ref,                  # out (T+1, 128) i32: path rows + start row
                      *, T, E, H, K, start_idx):
    E2 = 2 * E
    H2 = 2 * H
    off = slab_offsets(E, H, K)

    # ---- unpack constant slab (single DMA); MXU weight operands cast ONCE to bf16 ----
    win_bf = const_ref[off["win"]:off["win"] + E2, :].astype(jnp.bfloat16)      # (2E, 8H)
    whh_bf = const_ref[off["whh"]:off["whh"] + H2, :].astype(jnp.bfloat16)      # (2H, 8H)
    ball = const_ref[off["ball"]:off["ball"] + 1, :]                            # (1, 8H) f32
    wlin_bf = const_ref[off["wlin"]:off["wlin"] + H2, :].astype(jnp.bfloat16)   # (2H, 128)
    blin = const_ref[off["blin"]:off["blin"] + 1, :]                            # (1, 128) f32
    transT = const_ref[off["transT"]:off["transT"] + K, :][:, 0:K]              # (K,K) [prev,next]
    trans = const_ref[off["trans"]:off["trans"] + K, :][:, 0:K]                 # (K,K) [next,prev]
    tstop_col = const_ref[off["tstop_col"]:off["tstop_col"] + K, :][:, 0:1]     # (K,1)

    # ---- unpack per-call slab (single DMA) ----
    d = data_ref[...]                             # (T, 128)
    xcomb = d[:, 0:E2]                            # (T, 2E): row t = [x[t] | x[T-1-t]]
    h = d[0:1, E2:E2 + H2]                        # (1, 2H) = [h_fwd | h_bwd]
    c = d[1:2, E2:E2 + H2]                        # (1, 2H)

    # ---- (1) hoisted input projection: one lane-dense bf16 MXU op, bias folded in ----
    # Result row s (8H lanes), gate-major [i|f|o|g] / direction-minor:
    xproj = jnp.dot(xcomb.astype(jnp.bfloat16), win_bf,
                    preferred_element_type=jnp.float32) + ball                  # (T, 8H) f32

    # ---- (2) fused fwd+bwd recurrence, fully unrolled; cell math stays f32 ----
    rowi = lax.broadcasted_iota(jnp.int32, (T, 1), 0)          # (T, 1) row index
    accf = jnp.zeros((T, H), jnp.float32)                      # fwd hidden, time order
    accb = jnp.zeros((T, H), jnp.float32)                      # bwd hidden, time order
    for s in range(T):                 # fwd consumes timestep s, bwd consumes T-1-s
        gates = xproj[s:s + 1, :] + jnp.dot(h.astype(jnp.bfloat16), whh_bf,
                                            preferred_element_type=jnp.float32)  # (1, 8H)
        sig = jax.nn.sigmoid(gates[:, 0:3 * H2])               # i, f, o  (96 lanes, one EUP op)
        g_g = jnp.tanh(gates[:, 3 * H2:4 * H2])                # g        (32 lanes)
        i_g = sig[:, 0:H2]
        f_g = sig[:, H2:2 * H2]
        o_g = sig[:, 2 * H2:3 * H2]
        c = f_g * c + i_g * g_g
        h = o_g * jnp.tanh(c)
        accf = jnp.where(rowi == s, h[:, 0:H], accf)           # fwd hidden of timestep s
        accb = jnp.where(rowi == (T - 1 - s), h[:, H:H2], accb)  # bwd hidden of timestep T-1-s

    lstm_out = jnp.concatenate([accf, accb], axis=1)           # (T, 2H)

    # ---- (3) single lane-dense linear projection (lanes >= K are zero) ----
    feats = jnp.dot(lstm_out.astype(jnp.bfloat16), wlin_bf,
                    preferred_element_type=jnp.float32) + blin                  # (T, 128) f32
    out_f_ref[0:T, :] = feats

    # ---- (4) Viterbi DP, f32, alternating row/column orientation (no per-step XLU
    #          transpose on the serial chain) ----
    fk = feats[:, 0:K]                                         # (T, K) emissions
    sub_col = lax.broadcasted_iota(jnp.int32, (K, 1), 0)
    lane_row = lax.broadcasted_iota(jnp.int32, (1, K), 1)
    sub_mat = lax.broadcasted_iota(jnp.int32, (K, K), 0)
    lane_mat = lax.broadcasted_iota(jnp.int32, (K, K), 1)
    diag = lane_mat == sub_mat

    fv_col = jnp.where(sub_col == start_idx, 0.0, -10000.0)    # (K,1) over prev tags
    fv_row = jnp.zeros((1, K), jnp.float32)
    bps = []                                                   # backpointers stay in vregs
    for t in range(T):
        if t % 2 == 0:
            # fv is a column over prev; reduce over sublanes -> (1,K) row over next
            scores = fv_col + transT                                           # (K,K) [prev,next]
            mx = jnp.max(scores, axis=0, keepdims=True)                        # (1,K)
            bp = jnp.min(jnp.where(scores == mx, sub_mat, K),
                         axis=0, keepdims=True)                                # (1,K) best prev
            fv_row = mx + fk[t:t + 1, :]                                       # (1,K) over next
        else:
            # fv is a row over prev; reduce over lanes -> (K,1) column over next.
            # Emission column depends only on feats -> off the DP critical path.
            emit_col = jnp.sum(jnp.where(diag, fk[t:t + 1, :], 0.0),
                               axis=1, keepdims=True)                          # (K,1)
            scores = fv_row + trans                                            # (K,K) [next,prev]
            mx = jnp.max(scores, axis=1, keepdims=True)                        # (K,1)
            bp = jnp.min(jnp.where(scores == mx, lane_mat, K),
                         axis=1, keepdims=True)                                # (K,1) best prev
            fv_col = mx + emit_col                                             # (K,1) over next
        bps.append(bp)

    if T % 2 == 1:   # last DP state ended as a row -> convert once for the STOP add
        fv_col = jnp.sum(jnp.where(diag, fv_row, 0.0), axis=1, keepdims=True)
    final_col = fv_col + tstop_col                                             # (K,1)

    # ---- (5) in-kernel backtrace: one-hot select + reduce; lane-dense i32 row stores ----
    best_score = jnp.max(final_col, axis=0, keepdims=True)                     # (1,1)
    best = jnp.min(jnp.where(final_col == best_score, sub_col, K),
                   axis=0, keepdims=True)                                      # (1,1) argmax
    out_f_ref[T:T + 1, :] = jnp.broadcast_to(best_score, (1, LANES))
    out_i_ref[T - 1:T, :] = jnp.broadcast_to(best, (1, LANES))
    for t in range(T - 1, -1, -1):
        bp = bps[t]
        if t % 2 == 0:   # bp is a (1,K) row indexed by "next" over lanes
            best = jnp.sum(jnp.where(lane_row == best, bp, 0), axis=1, keepdims=True)
        else:            # bp is a (K,1) column indexed by "next" over sublanes
            best = jnp.sum(jnp.where(sub_col == best, bp, 0), axis=0, keepdims=True)
        if t > 0:
            out_i_ref[t - 1:t, :] = jnp.broadcast_to(best, (1, LANES))
        else:
            out_i_ref[T:T + 1, :] = jnp.broadcast_to(best, (1, LANES))         # start tag


def run_bilstm_crf(const_slab, data_slab, *, T, E, H, K, start_idx):
    out_f, out_i = pl.pallas_call(
        functools.partial(bilstm_crf_kernel, T=T, E=E, H=H, K=K, start_idx=int(start_idx)),
        out_shape=(jax.ShapeDtypeStruct((T + 1, LANES), jnp.float32),
                   jax.ShapeDtypeStruct((T + 1, LANES), jnp.int32)),
        in_specs=[pl.BlockSpec(memory_space=pltpu.MemorySpace.VMEM),
                  pl.BlockSpec(memory_space=pltpu.MemorySpace.VMEM)],
        out_specs=(pl.BlockSpec(memory_space=pltpu.MemorySpace.VMEM),
                   pl.BlockSpec(memory_space=pltpu.MemorySpace.VMEM)),
    )(const_slab, data_slab)
    feats = out_f[0:T, 0:K]
    score = out_f[T, 0]
    path = out_i[0:T, 0]
    start_tag = out_i[T, 0]
    return feats, score, path, start_tag


# ---------------------------------------------------------------------------
# Wrapper-side slab packing (constants: numpy at trace time; per-call data: jnp)
# ---------------------------------------------------------------------------
def build_const_slab(w_ih_f, w_hh_f, b_ih_f, b_hh_f,
                     w_ih_b, w_hh_b, b_ih_b, b_hh_b,
                     w_lin, b_lin, transitions, stop_idx, E, H, K):
    """Pack all parameters into one lane-dense f32 slab (8-row aligned sections).

    Fused LSTM weights are block-diagonal with gate-block order [i, f, o, g]
    (sigmoid gates contiguous, tanh gate last), direction-minor inside each block:
        gate block b, direction d (0=fwd,1=bwd) -> cols [2*b*H + d*H : 2*b*H + (d+1)*H]
    """
    assert 8 * H <= LANES and 2 * E <= LANES and K <= LANES
    off = slab_offsets(E, H, K)
    A = np.zeros((off["rows"], LANES), np.float32)

    w_ih_f = np.asarray(w_ih_f); w_hh_f = np.asarray(w_hh_f)
    w_ih_b = np.asarray(w_ih_b); w_hh_b = np.asarray(w_hh_b)
    b_f = np.asarray(b_ih_f) + np.asarray(b_hh_f)
    b_b = np.asarray(b_ih_b) + np.asarray(b_hh_b)

    torch_gate = [0, 1, 3, 2]        # PyTorch row-block order is i, f, g, o -> pick i,f,o,g
    for blk, g in enumerate(torch_gate):
        cf = slice(2 * blk * H, 2 * blk * H + H)
        cb = slice(2 * blk * H + H, 2 * (blk + 1) * H)
        A[off["win"]:off["win"] + E, cf] = w_ih_f[g * H:(g + 1) * H].T
        A[off["win"] + E:off["win"] + 2 * E, cb] = w_ih_b[g * H:(g + 1) * H].T
        A[off["whh"]:off["whh"] + H, cf] = w_hh_f[g * H:(g + 1) * H].T
        A[off["whh"] + H:off["whh"] + 2 * H, cb] = w_hh_b[g * H:(g + 1) * H].T
        A[off["ball"], cf] = b_f[g * H:(g + 1) * H]
        A[off["ball"], cb] = b_b[g * H:(g + 1) * H]

    w_lin = np.asarray(w_lin)                                    # (K, 2H)
    A[off["wlin"]:off["wlin"] + 2 * H, 0:K] = w_lin.T
    A[off["blin"], 0:K] = np.asarray(b_lin)

    tr = np.asarray(transitions)                                 # (K, K) [next, prev]
    A[off["transT"]:off["transT"] + K, 0:K] = tr.T               # [prev, next]
    A[off["trans"]:off["trans"] + K, 0:K] = tr                   # [next, prev]
    A[off["tstop_col"]:off["tstop_col"] + K, 0] = tr[stop_idx, :]
    return jnp.asarray(A)


def build_data_slab(x, h0, c0, E, H):
    """Pack per-call data into one (T,128) f32 slab: xcomb in lanes [0,2E),
    h0/c0 (each as [fwd | bwd]) in rows 0/1 of lanes [2E, 2E+2H)."""
    T = x.shape[0]
    assert 2 * E + 2 * H <= LANES and T >= 2
    xcomb = jnp.concatenate([x, x[::-1]], axis=1)                # (T, 2E): [x[t] | x[T-1-t]]
    B = jnp.zeros((T, LANES), jnp.float32)
    B = B.at[:, 0:2 * E].set(xcomb)
    B = B.at[0, 2 * E:2 * E + 2 * H].set(h0.reshape(-1))
    B = B.at[1, 2 * E:2 * E + 2 * H].set(c0.reshape(-1))
    return B


# ---------------------------------------------------------------------------
# Pure-JAX / numpy references (mirror the PyTorch forward) for sanity checks
# ---------------------------------------------------------------------------
def reference_feats(x, w_ih_f, w_hh_f, b_ih_f, b_hh_f, w_ih_b, w_hh_b, b_ih_b, b_hh_b,
                    w_lin, b_lin, h0, c0):
    T = x.shape[0]

    def run_dir(w_ih, w_hh, b_ih, b_hh, h, c, order):
        outs = {}
        for t in order:
            g = x[t] @ w_ih.T + h @ w_hh.T + b_ih + b_hh
            i, f, gg, o = jnp.split(g, 4)
            i = jax.nn.sigmoid(i); f = jax.nn.sigmoid(f)
            gg = jnp.tanh(gg); o = jax.nn.sigmoid(o)
            c = f * c + i * gg
            h = o * jnp.tanh(c)
            outs[t] = h
        return jnp.stack([outs[t] for t in range(T)])

    hf = run_dir(w_ih_f, w_hh_f, b_ih_f, b_hh_f, h0[0], c0[0], range(T))
    hb = run_dir(w_ih_b, w_hh_b, b_ih_b, b_hh_b, h0[1], c0[1], range(T - 1, -1, -1))
    lstm_out = jnp.concatenate([hf, hb], axis=-1)
    return lstm_out @ w_lin.T + b_lin


def reference_viterbi(feats, transitions, start_idx, stop_idx):
    feats = np.asarray(feats); trans = np.asarray(transitions)
    T, K = feats.shape
    fv = np.full((K,), -10000.0, np.float32); fv[start_idx] = 0.0
    bps = []
    for t in range(T):
        scores = fv[None, :] + trans            # [next, prev]
        bps.append(scores.argmax(1))
        fv = scores.max(1) + feats[t]
    final = fv + trans[stop_idx]
    best = int(final.argmax()); score = float(final[best])
    path = [best]
    for bp_t in reversed(bps):
        best = int(bp_t[best]); path.append(best)
    start = path.pop(); path.reverse()
    return score, path, start


# ---------------------------------------------------------------------------
if __name__ == "__main__":
    # module config (args of BiLSTM_CRF)
    vocab_size = 20
    embedding_dim = 16
    hidden_dim = 32                       # per-direction H = 16
    tag_to_idx = {"B": 0, "I": 1, "O": 2, "<START>": 3, "<STOP>": 4}
    tagset_size = len(tag_to_idx)
    START_TAG, STOP_TAG = "<START>", "<STOP>"
    seq_len = 8
    H = hidden_dim // 2
    E = embedding_dim
    K = tagset_size

    key = jax.random.PRNGKey(0)
    ks = jax.random.split(key, 16)

    # deterministic synthetic parameters (shapes match nn.Module.__init__)
    embedding = jax.random.normal(ks[0], (vocab_size, embedding_dim), jnp.float32)
    w_ih_f = 0.1 * jax.random.normal(ks[1], (4 * H, embedding_dim), jnp.float32)
    w_hh_f = 0.1 * jax.random.normal(ks[2], (4 * H, H), jnp.float32)
    b_ih_f = 0.1 * jax.random.normal(ks[3], (4 * H,), jnp.float32)
    b_hh_f = 0.1 * jax.random.normal(ks[4], (4 * H,), jnp.float32)
    w_ih_b = 0.1 * jax.random.normal(ks[5], (4 * H, embedding_dim), jnp.float32)
    w_hh_b = 0.1 * jax.random.normal(ks[6], (4 * H, H), jnp.float32)
    b_ih_b = 0.1 * jax.random.normal(ks[7], (4 * H,), jnp.float32)
    b_hh_b = 0.1 * jax.random.normal(ks[8], (4 * H,), jnp.float32)
    w_lin = 0.1 * jax.random.normal(ks[9], (tagset_size, hidden_dim), jnp.float32)
    b_lin = 0.1 * jax.random.normal(ks[10], (tagset_size,), jnp.float32)
    transitions = jax.random.normal(ks[11], (K, K), jnp.float32)
    transitions = transitions.at[tag_to_idx[START_TAG], :].set(-10000.0)
    transitions = transitions.at[:, tag_to_idx[STOP_TAG]].set(-10000.0)
    # _init_hidden draws fresh randns each forward; made deterministic with PRNGKey(0)
    h0 = jax.random.normal(ks[12], (2, H), jnp.float32)
    c0 = jax.random.normal(ks[13], (2, H), jnp.float32)

    sentence = jax.random.randint(ks[14], (seq_len,), 0, vocab_size)

    # ---- glue: embedding gather + slab packing (2 input DMAs total) ----
    x = embedding[sentence]                                            # (T, E)
    const_slab = build_const_slab(w_ih_f, w_hh_f, b_ih_f, b_hh_f,
                                  w_ih_b, w_hh_b, b_ih_b, b_hh_b,
                                  w_lin, b_lin, transitions,
                                  tag_to_idx[STOP_TAG], E, H, K)       # (136, 128) f32
    data_slab = build_data_slab(x, h0, c0, E, H)                       # (8, 128)  f32

    # ---- fused kernel: BiLSTM feats + Viterbi decode + backtrace ----
    feats, score, path, start_tag = run_bilstm_crf(
        const_slab, data_slab, T=seq_len, E=E, H=H, K=K, start_idx=tag_to_idx[START_TAG])

    feats, score, path, start_tag = jax.block_until_ready((feats, score, path, start_tag))

    # ---- sanity checks against pure-JAX / numpy references of the PyTorch forward ----
    feats_gold = reference_feats(x, w_ih_f, w_hh_f, b_ih_f, b_hh_f,
                                 w_ih_b, w_hh_b, b_ih_b, b_hh_b,
                                 w_lin, b_lin, h0, c0)
    # tolerance loosened vs f32-only version: MXU operands are bf16 (f32 accumulation)
    assert np.allclose(np.asarray(feats), np.asarray(feats_gold), atol=2e-2, rtol=2e-2), \
        float(np.max(np.abs(np.asarray(feats) - np.asarray(feats_gold))))

    score_gold, path_gold, start_gold = reference_viterbi(
        np.asarray(feats), transitions, tag_to_idx[START_TAG], tag_to_idx[STOP_TAG])
    assert int(start_tag) == tag_to_idx[START_TAG]
    assert start_gold == tag_to_idx[START_TAG]
    assert [int(v) for v in np.asarray(path)] == path_gold
    assert abs(float(score) - score_gold) < 1e-2

    print("KERNEL_OK")
</pallas_src>

<mosaic_0001>
module attributes {stable_mosaic.version = 11 : i64} {
  func.func @bilstm_crf_kernel(%arg0: memref<136x128xf32, #tpu.memory_space<vmem>>, %arg1: memref<8x128xf32, #tpu.memory_space<vmem>>, %arg2: memref<9x128xf32, #tpu.memory_space<vmem>>, %arg3: memref<9x128xi32, #tpu.memory_space<vmem>>) attributes {dimension_semantics = [], scalar_prefetch = 0 : i64, scratch_operands = 0 : i64, tpu.core_type = #tpu.core_type<tc>} {
    %c0 = arith.constant 0 : index
    %c0_0 = arith.constant 0 : index
    %0 = vector.load %arg0[%c0, %c0_0] : memref<136x128xf32, #tpu.memory_space<vmem>>, vector<32x128xf32>
    %1 = arith.truncf %0 : vector<32x128xf32> to vector<32x128xbf16>
    %c32 = arith.constant 32 : index
    %c0_1 = arith.constant 0 : index
    %2 = vector.load %arg0[%c32, %c0_1] : memref<136x128xf32, #tpu.memory_space<vmem>>, vector<32x128xf32>
    %3 = arith.truncf %2 : vector<32x128xf32> to vector<32x128xbf16>
    %c64 = arith.constant 64 : index
    %c0_2 = arith.constant 0 : index
    %4 = vector.load %arg0[%c64, %c0_2] : memref<136x128xf32, #tpu.memory_space<vmem>>, vector<1x128xf32>
    %c72 = arith.constant 72 : index
    %c0_3 = arith.constant 0 : index
    %5 = vector.load %arg0[%c72, %c0_3] : memref<136x128xf32, #tpu.memory_space<vmem>>, vector<32x128xf32>
    %6 = arith.truncf %5 : vector<32x128xf32> to vector<32x128xbf16>
    %c104 = arith.constant 104 : index
    %c0_4 = arith.constant 0 : index
    %7 = vector.load %arg0[%c104, %c0_4] : memref<136x128xf32, #tpu.memory_space<vmem>>, vector<1x128xf32>
    %c112 = arith.constant 112 : index
    %c0_5 = arith.constant 0 : index
    %8 = vector.load %arg0[%c112, %c0_5] : memref<136x128xf32, #tpu.memory_space<vmem>>, vector<5x128xf32>
    %9 = vector.extract_strided_slice %8 {offsets = [0, 0], sizes = [5, 5], strides = [1, 1]} : vector<5x128xf32> to vector<5x5xf32>
    %c120 = arith.constant 120 : index
    %c0_6 = arith.constant 0 : index
    %10 = vector.load %arg0[%c120, %c0_6] : memref<136x128xf32, #tpu.memory_space<vmem>>, vector<5x128xf32>
    %11 = vector.extract_strided_slice %10 {offsets = [0, 0], sizes = [5, 5], strides = [1, 1]} : vector<5x128xf32> to vector<5x5xf32>
    %c128 = arith.constant 128 : index
    %c0_7 = arith.constant 0 : index
    %12 = vector.load %arg0[%c128, %c0_7] : memref<136x128xf32, #tpu.memory_space<vmem>>, vector<5x128xf32>
    %13 = vector.extract_strided_slice %12 {offsets = [0, 0], sizes = [5, 1], strides = [1, 1]} : vector<5x128xf32> to vector<5x1xf32>
    %c0_8 = arith.constant 0 : index
    %c0_9 = arith.constant 0 : index
    %14 = vector.load %arg1[%c0_8, %c0_9] : memref<8x128xf32, #tpu.memory_space<vmem>>, vector<8x128xf32>
    %15 = vector.extract_strided_slice %14 {offsets = [0, 0], sizes = [8, 32], strides = [1, 1]} : vector<8x128xf32> to vector<8x32xf32>
    %16 = vector.extract_strided_slice %14 {offsets = [0, 32], sizes = [1, 32], strides = [1, 1]} : vector<8x128xf32> to vector<1x32xf32>
    %17 = vector.extract_strided_slice %14 {offsets = [1, 32], sizes = [1, 32], strides = [1, 1]} : vector<8x128xf32> to vector<1x32xf32>
    %18 = arith.truncf %15 : vector<8x32xf32> to vector<8x32xbf16>
    %cst = arith.constant dense<0.000000e+00> : vector<8x128xf32>
    %19 = tpu.matmul %18, %1, %cst {dimension_numbers = #tpu.dot_dimension_numbers<[1], [0], [0], [1], [0, 0, 1, 1], [], []>} : vector<8x32xbf16>, vector<32x128xbf16>, vector<8x128xf32> -> vector<8x128xf32>
    %20 = vector.broadcast %4 : vector<1x128xf32> to vector<8x128xf32>
    %21 = arith.addf %19, %20 : vector<8x128xf32>
    %22 = tpu.iota {dimensions = array<i32: 0>} : vector<8x1xi32>
    %cst_10 = arith.constant 0.000000e+00 : f32
    %23 = vector.broadcast %cst_10 : f32 to vector<8x16xf32>
    %cst_11 = arith.constant 0.000000e+00 : f32
    %24 = vector.broadcast %cst_11 : f32 to vector<8x16xf32>
    %25 = vector.extract_strided_slice %21 {offsets = [0, 0], sizes = [1, 128], strides = [1, 1]} : vector<8x128xf32> to vector<1x128xf32>
    %26 = arith.truncf %16 : vector<1x32xf32> to vector<1x32xbf16>
    %cst_12 = arith.constant dense<0.000000e+00> : vector<1x128xf32>
    %27 = tpu.matmul %26, %3, %cst_12 {dimension_numbers = #tpu.dot_dimension_numbers<[1], [0], [0], [1], [0, 0, 1, 1], [], []>} : vector<1x32xbf16>, vector<32x128xbf16>, vector<1x128xf32> -> vector<1x128xf32>
    %28 = arith.addf %25, %27 : vector<1x128xf32>
    %29 = vector.extract_strided_slice %28 {offsets = [0, 0], sizes = [1, 96], strides = [1, 1]} : vector<1x128xf32> to vector<1x96xf32>
    %30 = arith.negf %29 : vector<1x96xf32>
    %31 = math.exp %30 : vector<1x96xf32>
    %cst_13 = arith.constant 1.000000e+00 : f32
    %32 = vector.broadcast %cst_13 : f32 to vector<1x96xf32>
    %33 = arith.addf %32, %31 : vector<1x96xf32>
    %34 = arith.divf %32, %33 : vector<1x96xf32>
    %35 = vector.extract_strided_slice %28 {offsets = [0, 96], sizes = [1, 32], strides = [1, 1]} : vector<1x128xf32> to vector<1x32xf32>
    %36 = math.tanh %35 : vector<1x32xf32>
    %37 = vector.extract_strided_slice %34 {offsets = [0, 0], sizes = [1, 32], strides = [1, 1]} : vector<1x96xf32> to vector<1x32xf32>
    %38 = vector.extract_strided_slice %34 {offsets = [0, 32], sizes = [1, 32], strides = [1, 1]} : vector<1x96xf32> to vector<1x32xf32>
    %39 = vector.extract_strided_slice %34 {offsets = [0, 64], sizes = [1, 32], strides = [1, 1]} : vector<1x96xf32> to vector<1x32xf32>
    %40 = arith.mulf %38, %17 : vector<1x32xf32>
    %41 = arith.mulf %37, %36 : vector<1x32xf32>
    %42 = arith.addf %40, %41 : vector<1x32xf32>
    %43 = math.tanh %42 : vector<1x32xf32>
    %44 = arith.mulf %39, %43 : vector<1x32xf32>
    %c0_i32 = arith.constant 0 : i32
    %45 = vector.broadcast %c0_i32 : i32 to vector<8x1xi32>
    %46 = arith.cmpi eq, %22, %45 : vector<8x1xi32>
    %47 = vector.extract_strided_slice %44 {offsets = [0, 0], sizes = [1, 16], strides = [1, 1]} : vector<1x32xf32> to vector<1x16xf32>
    %48 = vector.shape_cast %46 : vector<8x1xi1> to vector<8x1xi1>
    %49 = vector.broadcast %48 : vector<8x1xi1> to vector<8x16xi1>
    %50 = vector.shape_cast %47 : vector<1x16xf32> to vector<1x16xf32>
    %51 = vector.broadcast %50 : vector<1x16xf32> to vector<8x16xf32>
    %52 = arith.select %49, %51, %23 : vector<8x16xi1>, vector<8x16xf32>
    %c7_i32 = arith.constant 7 : i32
    %53 = vector.broadcast %c7_i32 : i32 to vector<8x1xi32>
    %54 = arith.cmpi eq, %22, %53 : vector<8x1xi32>
    %55 = vector.extract_strided_slice %44 {offsets = [0, 16], sizes = [1, 16], strides = [1, 1]} : vector<1x32xf32> to vector<1x16xf32>
    %56 = vector.shape_cast %54 : vector<8x1xi1> to vector<8x1xi1>
    %57 = vector.broadcast %56 : vector<8x1xi1> to vector<8x16xi1>
    %58 = vector.shape_cast %55 : vector<1x16xf32> to vector<1x16xf32>
    %59 = vector.broadcast %58 : vector<1x16xf32> to vector<8x16xf32>
    %60 = arith.select %57, %59, %24 : vector<8x16xi1>, vector<8x16xf32>
    %61 = vector.extract_strided_slice %21 {offsets = [1, 0], sizes = [1, 128], strides = [1, 1]} : vector<8x128xf32> to vector<1x128xf32>
    %62 = arith.truncf %44 : vector<1x32xf32> to vector<1x32xbf16>
    %cst_14 = arith.constant dense<0.000000e+00> : vector<1x128xf32>
    %63 = tpu.matmul %62, %3, %cst_14 {dimension_numbers = #tpu.dot_dimension_numbers<[1], [0], [0], [1], [0, 0, 1, 1], [], []>} : vector<1x32xbf16>, vector<32x128xbf16>, vector<1x128xf32> -> vector<1x128xf32>
    %64 = arith.addf %61, %63 : vector<1x128xf32>
    %65 = vector.extract_strided_slice %64 {offsets = [0, 0], sizes = [1, 96], strides = [1, 1]} : vector<1x128xf32> to vector<1x96xf32>
    %66 = arith.negf %65 : vector<1x96xf32>
    %67 = math.exp %66 : vector<1x96xf32>
    %cst_15 = arith.constant 1.000000e+00 : f32
    %68 = vector.broadcast %cst_15 : f32 to vector<1x96xf32>
    %69 = arith.addf %68, %67 : vector<1x96xf32>
    %70 = arith.divf %68, %69 : vector<1x96xf32>
    %71 = vector.extract_strided_slice %64 {offsets = [0, 96], sizes = [1, 32], strides = [1, 1]} : vector<1x128xf32> to vector<1x32xf32>
    %72 = math.tanh %71 : vector<1x32xf32>
    %73 = vector.extract_strided_slice %70 {offsets = [0, 0], sizes = [1, 32], strides = [1, 1]} : vector<1x96xf32> to vector<1x32xf32>
    %74 = vector.extract_strided_slice %70 {offsets = [0, 32], sizes = [1, 32], strides = [1, 1]} : vector<1x96xf32> to vector<1x32xf32>
    %75 = vector.extract_strided_slice %70 {offsets = [0, 64], sizes = [1, 32], strides = [1, 1]} : vector<1x96xf32> to vector<1x32xf32>
    %76 = arith.mulf %74, %42 : vector<1x32xf32>
    %77 = arith.mulf %73, %72 : vector<1x32xf32>
    %78 = arith.addf %76, %77 : vector<1x32xf32>
    %79 = math.tanh %78 : vector<1x32xf32>
    %80 = arith.mulf %75, %79 : vector<1x32xf32>
    %c1_i32 = arith.constant 1 : i32
    %81 = vector.broadcast %c1_i32 : i32 to vector<8x1xi32>
    %82 = arith.cmpi eq, %22, %81 : vector<8x1xi32>
    %83 = vector.extract_strided_slice %80 {offsets = [0, 0], sizes = [1, 16], strides = [1, 1]} : vector<1x32xf32> to vector<1x16xf32>
    %84 = vector.shape_cast %82 : vector<8x1xi1> to vector<8x1xi1>
    %85 = vector.broadcast %84 : vector<8x1xi1> to vector<8x16xi1>
    %86 = vector.shape_cast %83 : vector<1x16xf32> to vector<1x16xf32>
    %87 = vector.broadcast %86 : vector<1x16xf32> to vector<8x16xf32>
    %88 = arith.select %85, %87, %52 : vector<8x16xi1>, vector<8x16xf32>
    %c6_i32 = arith.constant 6 : i32
    %89 = vector.broadcast %c6_i32 : i32 to vector<8x1xi32>
    %90 = arith.cmpi eq, %22, %89 : vector<8x1xi32>
    %91 = vector.extract_strided_slice %80 {offsets = [0, 16], sizes = [1, 16], strides = [1, 1]} : vector<1x32xf32> to vector<1x16xf32>
    %92 = vector.shape_cast %90 : vector<8x1xi1> to vector<8x1xi1>
    %93 = vector.broadcast %92 : vector<8x1xi1> to vector<8x16xi1>
    %94 = vector.shape_cast %91 : vector<1x16xf32> to vector<1x16xf32>
    %95 = vector.broadcast %94 : vector<1x16xf32> to vector<8x16xf32>
    %96 = arith.select %93, %95, %60 : vector<8x16xi1>, vector<8x16xf32>
    %97 = vector.extract_strided_slice %21 {offsets = [2, 0], sizes = [1, 128], strides = [1, 1]} : vector<8x128xf32> to vector<1x128xf32>
    %98 = arith.truncf %80 : vector<1x32xf32> to vector<1x32xbf16>
    %cst_16 = arith.constant dense<0.000000e+00> : vector<1x128xf32>
    %99 = tpu.matmul %98, %3, %cst_16 {dimension_numbers = #tpu.dot_dimension_numbers<[1], [0], [0], [1], [0, 0, 1, 1], [], []>} : vector<1x32xbf16>, vector<32x128xbf16>, vector<1x128xf32> -> vector<1x128xf32>
    %100 = arith.addf %97, %99 : vector<1x128xf32>
    %101 = vector.extract_strided_slice %100 {offsets = [0, 0], sizes = [1, 96], strides = [1, 1]} : vector<1x128xf32> to vector<1x96xf32>
    %102 = arith.negf %101 : vector<1x96xf32>
    %103 = math.exp %102 : vector<1x96xf32>
    %cst_17 = arith.constant 1.000000e+00 : f32
    %104 = vector.broadcast %cst_17 : f32 to vector<1x96xf32>
    %105 = arith.addf %104, %103 : vector<1x96xf32>
    %106 = arith.divf %104, %105 : vector<1x96xf32>
    %107 = vector.extract_strided_slice %100 {offsets = [0, 96], sizes = [1, 32], strides = [1, 1]} : vector<1x128xf32> to vector<1x32xf32>
    %108 = math.tanh %107 : vector<1x32xf32>
    %109 = vector.extract_strided_slice %106 {offsets = [0, 0], sizes = [1, 32], strides = [1, 1]} : vector<1x96xf32> to vector<1x32xf32>
    %110 = vector.extract_strided_slice %106 {offsets = [0, 32], sizes = [1, 32], strides = [1, 1]} : vector<1x96xf32> to vector<1x32xf32>
    %111 = vector.extract_strided_slice %106 {offsets = [0, 64], sizes = [1, 32], strides = [1, 1]} : vector<1x96xf32> to vector<1x32xf32>
    %112 = arith.mulf %110, %78 : vector<1x32xf32>
    %113 = arith.mulf %109, %108 : vector<1x32xf32>
    %114 = arith.addf %112, %113 : vector<1x32xf32>
    %115 = math.tanh %114 : vector<1x32xf32>
    %116 = arith.mulf %111, %115 : vector<1x32xf32>
    %c2_i32 = arith.constant 2 : i32
    %117 = vector.broadcast %c2_i32 : i32 to vector<8x1xi32>
    %118 = arith.cmpi eq, %22, %117 : vector<8x1xi32>
    %119 = vector.extract_strided_slice %116 {offsets = [0, 0], sizes = [1, 16], strides = [1, 1]} : vector<1x32xf32> to vector<1x16xf32>
    %120 = vector.shape_cast %118 : vector<8x1xi1> to vector<8x1xi1>
    %121 = vector.broadcast %120 : vector<8x1xi1> to vector<8x16xi1>
    %122 = vector.shape_cast %119 : vector<1x16xf32> to vector<1x16xf32>
    %123 = vector.broadcast %122 : vector<1x16xf32> to vector<8x16xf32>
    %124 = arith.select %121, %123, %88 : vector<8x16xi1>, vector<8x16xf32>
    %c5_i32 = arith.constant 5 : i32
    %125 = vector.broadcast %c5_i32 : i32 to vector<8x1xi32>
    %126 = arith.cmpi eq, %22, %125 : vector<8x1xi32>
    %127 = vector.extract_strided_slice %116 {offsets = [0, 16], sizes = [1, 16], strides = [1, 1]} : vector<1x32xf32> to vector<1x16xf32>
    %128 = vector.shape_cast %126 : vector<8x1xi1> to vector<8x1xi1>
    %129 = vector.broadcast %128 : vector<8x1xi1> to vector<8x16xi1>
    %130 = vector.shape_cast %127 : vector<1x16xf32> to vector<1x16xf32>
    %131 = vector.broadcast %130 : vector<1x16xf32> to vector<8x16xf32>
    %132 = arith.select %129, %131, %96 : vector<8x16xi1>, vector<8x16xf32>
    %133 = vector.extract_strided_slice %21 {offsets = [3, 0], sizes = [1, 128], strides = [1, 1]} : vector<8x128xf32> to vector<1x128xf32>
    %134 = arith.truncf %116 : vector<1x32xf32> to vector<1x32xbf16>
    %cst_18 = arith.constant dense<0.000000e+00> : vector<1x128xf32>
    %135 = tpu.matmul %134, %3, %cst_18 {dimension_numbers = #tpu.dot_dimension_numbers<[1], [0], [0], [1], [0, 0, 1, 1], [], []>} : vector<1x32xbf16>, vector<32x128xbf16>, vector<1x128xf32> -> vector<1x128xf32>
    %136 = arith.addf %133, %135 : vector<1x128xf32>
    %137 = vector.extract_strided_slice %136 {offsets = [0, 0], sizes = [1, 96], strides = [1, 1]} : vector<1x128xf32> to vector<1x96xf32>
    %138 = arith.negf %137 : vector<1x96xf32>
    %139 = math.exp %138 : vector<1x96xf32>
    %cst_19 = arith.constant 1.000000e+00 : f32
    %140 = vector.broadcast %cst_19 : f32 to vector<1x96xf32>
    %141 = arith.addf %140, %139 : vector<1x96xf32>
    %142 = arith.divf %140, %141 : vector<1x96xf32>
    %143 = vector.extract_strided_slice %136 {offsets = [0, 96], sizes = [1, 32], strides = [1, 1]} : vector<1x128xf32> to vector<1x32xf32>
    %144 = math.tanh %143 : vector<1x32xf32>
    %145 = vector.extract_strided_slice %142 {offsets = [0, 0], sizes = [1, 32], strides = [1, 1]} : vector<1x96xf32> to vector<1x32xf32>
    %146 = vector.extract_strided_slice %142 {offsets = [0, 32], sizes = [1, 32], strides = [1, 1]} : vector<1x96xf32> to vector<1x32xf32>
    %147 = vector.extract_strided_slice %142 {offsets = [0, 64], sizes = [1, 32], strides = [1, 1]} : vector<1x96xf32> to vector<1x32xf32>
    %148 = arith.mulf %146, %114 : vector<1x32xf32>
    %149 = arith.mulf %145, %144 : vector<1x32xf32>
    %150 = arith.addf %148, %149 : vector<1x32xf32>
    %151 = math.tanh %150 : vector<1x32xf32>
    %152 = arith.mulf %147, %151 : vector<1x32xf32>
    %c3_i32 = arith.constant 3 : i32
    %153 = vector.broadcast %c3_i32 : i32 to vector<8x1xi32>
    %154 = arith.cmpi eq, %22, %153 : vector<8x1xi32>
    %155 = vector.extract_strided_slice %152 {offsets = [0, 0], sizes = [1, 16], strides = [1, 1]} : vector<1x32xf32> to vector<1x16xf32>
    %156 = vector.shape_cast %154 : vector<8x1xi1> to vector<8x1xi1>
    %157 = vector.broadcast %156 : vector<8x1xi1> to vector<8x16xi1>
    %158 = vector.shape_cast %155 : vector<1x16xf32> to vector<1x16xf32>
    %159 = vector.broadcast %158 : vector<1x16xf32> to vector<8x16xf32>
    %160 = arith.select %157, %159, %124 : vector<8x16xi1>, vector<8x16xf32>
    %c4_i32 = arith.constant 4 : i32
    %161 = vector.broadcast %c4_i32 : i32 to vector<8x1xi32>
    %162 = arith.cmpi eq, %22, %161 : vector<8x1xi32>
    %163 = vector.extract_strided_slice %152 {offsets = [0, 16], sizes = [1, 16], strides = [1, 1]} : vector<1x32xf32> to vector<1x16xf32>
    %164 = vector.shape_cast %162 : vector<8x1xi1> to vector<8x1xi1>
    %165 = vector.broadcast %164 : vector<8x1xi1> to vector<8x16xi1>
    %166 = vector.shape_cast %163 : vector<1x16xf32> to vector<1x16xf32>
    %167 = vector.broadcast %166 : vector<1x16xf32> to vector<8x16xf32>
    %168 = arith.select %165, %167, %132 : vector<8x16xi1>, vector<8x16xf32>
    %169 = vector.extract_strided_slice %21 {offsets = [4, 0], sizes = [1, 128], strides = [1, 1]} : vector<8x128xf32> to vector<1x128xf32>
    %170 = arith.truncf %152 : vector<1x32xf32> to vector<1x32xbf16>
    %cst_20 = arith.constant dense<0.000000e+00> : vector<1x128xf32>
    %171 = tpu.matmul %170, %3, %cst_20 {dimension_numbers = #tpu.dot_dimension_numbers<[1], [0], [0], [1], [0, 0, 1, 1], [], []>} : vector<1x32xbf16>, vector<32x128xbf16>, vector<1x128xf32> -> vector<1x128xf32>
    %172 = arith.addf %169, %171 : vector<1x128xf32>
    %173 = vector.extract_strided_slice %172 {offsets = [0, 0], sizes = [1, 96], strides = [1, 1]} : vector<1x128xf32> to vector<1x96xf32>
    %174 = arith.negf %173 : vector<1x96xf32>
    %175 = math.exp %174 : vector<1x96xf32>
    %cst_21 = arith.constant 1.000000e+00 : f32
    %176 = vector.broadcast %cst_21 : f32 to vector<1x96xf32>
    %177 = arith.addf %176, %175 : vector<1x96xf32>
    %178 = arith.divf %176, %177 : vector<1x96xf32>
    %179 = vector.extract_strided_slice %172 {offsets = [0, 96], sizes = [1, 32], strides = [1, 1]} : vector<1x128xf32> to vector<1x32xf32>
    %180 = math.tanh %179 : vector<1x32xf32>
    %181 = vector.extract_strided_slice %178 {offsets = [0, 0], sizes = [1, 32], strides = [1, 1]} : vector<1x96xf32> to vector<1x32xf32>
    %182 = vector.extract_strided_slice %178 {offsets = [0, 32], sizes = [1, 32], strides = [1, 1]} : vector<1x96xf32> to vector<1x32xf32>
    %183 = vector.extract_strided_slice %178 {offsets = [0, 64], sizes = [1, 32], strides = [1, 1]} : vector<1x96xf32> to vector<1x32xf32>
    %184 = arith.mulf %182, %150 : vector<1x32xf32>
    %185 = arith.mulf %181, %180 : vector<1x32xf32>
    %186 = arith.addf %184, %185 : vector<1x32xf32>
    %187 = math.tanh %186 : vector<1x32xf32>
    %188 = arith.mulf %183, %187 : vector<1x32xf32>
    %c4_i32_22 = arith.constant 4 : i32
    %189 = vector.broadcast %c4_i32_22 : i32 to vector<8x1xi32>
    %190 = arith.cmpi eq, %22, %189 : vector<8x1xi32>
    %191 = vector.extract_strided_slice %188 {offsets = [0, 0], sizes = [1, 16], strides = [1, 1]} : vector<1x32xf32> to vector<1x16xf32>
    %192 = vector.shape_cast %190 : vector<8x1xi1> to vector<8x1xi1>
    %193 = vector.broadcast %192 : vector<8x1xi1> to vector<8x16xi1>
    %194 = vector.shape_cast %191 : vector<1x16xf32> to vector<1x16xf32>
    %195 = vector.broadcast %194 : vector<1x16xf32> to vector<8x16xf32>
    %196 = arith.select %193, %195, %160 : vector<8x16xi1>, vector<8x16xf32>
    %c3_i32_23 = arith.constant 3 : i32
    %197 = vector.broadcast %c3_i32_23 : i32 to vector<8x1xi32>
    %198 = arith.cmpi eq, %22, %197 : vector<8x1xi32>
    %199 = vector.extract_strided_slice %188 {offsets = [0, 16], sizes = [1, 16], strides = [1, 1]} : vector<1x32xf32> to vector<1x16xf32>
    %200 = vector.shape_cast %198 : vector<8x1xi1> to vector<8x1xi1>
    %201 = vector.broadcast %200 : vector<8x1xi1> to vector<8x16xi1>
    %202 = vector.shape_cast %199 : vector<1x16xf32> to vector<1x16xf32>
    %203 = vector.broadcast %202 : vector<1x16xf32> to vector<8x16xf32>
    %204 = arith.select %201, %203, %168 : vector<8x16xi1>, vector<8x16xf32>
    %205 = vector.extract_strided_slice %21 {offsets = [5, 0], sizes = [1, 128], strides = [1, 1]} : vector<8x128xf32> to vector<1x128xf32>
    %206 = arith.truncf %188 : vector<1x32xf32> to vector<1x32xbf16>
    %cst_24 = arith.constant dense<0.000000e+00> : vector<1x128xf32>
    %207 = tpu.matmul %206, %3, %cst_24 {dimension_numbers = #tpu.dot_dimension_numbers<[1], [0], [0], [1], [0, 0, 1, 1], [], []>} : vector<1x32xbf16>, vector<32x128xbf16>, vector<1x128xf32> -> vector<1x128xf32>
    %208 = arith.addf %205, %207 : vector<1x128xf32>
    %209 = vector.extract_strided_slice %208 {offsets = [0, 0], sizes = [1, 96], strides = [1, 1]} : vector<1x128xf32> to vector<1x96xf32>
    %210 = arith.negf %209 : vector<1x96xf32>
    %211 = math.exp %210 : vector<1x96xf32>
    %cst_25 = arith.constant 1.000000e+00 : f32
    %212 = vector.broadcast %cst_25 : f32 to vector<1x96xf32>
    %213 = arith.addf %212, %211 : vector<1x96xf32>
    %214 = arith.divf %212, %213 : vector<1x96xf32>
    %215 = vector.extract_strided_slice %208 {offsets = [0, 96], sizes = [1, 32], strides = [1, 1]} : vector<1x128xf32> to vector<1x32xf32>
    %216 = math.tanh %215 : vector<1x32xf32>
    %217 = vector.extract_strided_slice %214 {offsets = [0, 0], sizes = [1, 32], strides = [1, 1]} : vector<1x96xf32> to vector<1x32xf32>
    %218 = vector.extract_strided_slice %214 {offsets = [0, 32], sizes = [1, 32], strides = [1, 1]} : vector<1x96xf32> to vector<1x32xf32>
    %219 = vector.extract_strided_slice %214 {offsets = [0, 64], sizes = [1, 32], strides = [1, 1]} : vector<1x96xf32> to vector<1x32xf32>
    %220 = arith.mulf %218, %186 : vector<1x32xf32>
    %221 = arith.mulf %217, %216 : vector<1x32xf32>
    %222 = arith.addf %220, %221 : vector<1x32xf32>
    %223 = math.tanh %222 : vector<1x32xf32>
    %224 = arith.mulf %219, %223 : vector<1x32xf32>
    %c5_i32_26 = arith.constant 5 : i32
    %225 = vector.broadcast %c5_i32_26 : i32 to vector<8x1xi32>
    %226 = arith.cmpi eq, %22, %225 : vector<8x1xi32>
    %227 = vector.extract_strided_slice %224 {offsets = [0, 0], sizes = [1, 16], strides = [1, 1]} : vector<1x32xf32> to vector<1x16xf32>
    %228 = vector.shape_cast %226 : vector<8x1xi1> to vector<8x1xi1>
    %229 = vector.broadcast %228 : vector<8x1xi1> to vector<8x16xi1>
    %230 = vector.shape_cast %227 : vector<1x16xf32> to vector<1x16xf32>
    %231 = vector.broadcast %230 : vector<1x16xf32> to vector<8x16xf32>
    %232 = arith.select %229, %231, %196 : vector<8x16xi1>, vector<8x16xf32>
    %c2_i32_27 = arith.constant 2 : i32
    %233 = vector.broadcast %c2_i32_27 : i32 to vector<8x1xi32>
    %234 = arith.cmpi eq, %22, %233 : vector<8x1xi32>
    %235 = vector.extract_strided_slice %224 {offsets = [0, 16], sizes = [1, 16], strides = [1, 1]} : vector<1x32xf32> to vector<1x16xf32>
    %236 = vector.shape_cast %234 : vector<8x1xi1> to vector<8x1xi1>
    %237 = vector.broadcast %236 : vector<8x1xi1> to vector<8x16xi1>
    %238 = vector.shape_cast %235 : vector<1x16xf32> to vector<1x16xf32>
    %239 = vector.broadcast %238 : vector<1x16xf32> to vector<8x16xf32>
    %240 = arith.select %237, %239, %204 : vector<8x16xi1>, vector<8x16xf32>
    %241 = vector.extract_strided_slice %21 {offsets = [6, 0], sizes = [1, 128], strides = [1, 1]} : vector<8x128xf32> to vector<1x128xf32>
    %242 = arith.truncf %224 : vector<1x32xf32> to vector<1x32xbf16>
    %cst_28 = arith.constant dense<0.000000e+00> : vector<1x128xf32>
    %243 = tpu.matmul %242, %3, %cst_28 {dimension_numbers = #tpu.dot_dimension_numbers<[1], [0], [0], [1], [0, 0, 1, 1], [], []>} : vector<1x32xbf16>, vector<32x128xbf16>, vector<1x128xf32> -> vector<1x128xf32>
    %244 = arith.addf %241, %243 : vector<1x128xf32>
    %245 = vector.extract_strided_slice %244 {offsets = [0, 0], sizes = [1, 96], strides = [1, 1]} : vector<1x128xf32> to vector<1x96xf32>
    %246 = arith.negf %245 : vector<1x96xf32>
    %247 = math.exp %246 : vector<1x96xf32>
    %cst_29 = arith.constant 1.000000e+00 : f32
    %248 = vector.broadcast %cst_29 : f32 to vector<1x96xf32>
    %249 = arith.addf %248, %247 : vector<1x96xf32>
    %250 = arith.divf %248, %249 : vector<1x96xf32>
    %251 = vector.extract_strided_slice %244 {offsets = [0, 96], sizes = [1, 32], strides = [1, 1]} : vector<1x128xf32> to vector<1x32xf32>
    %252 = math.tanh %251 : vector<1x32xf32>
    %253 = vector.extract_strided_slice %250 {offsets = [0, 0], sizes = [1, 32], strides = [1, 1]} : vector<1x96xf32> to vector<1x32xf32>
    %254 = vector.extract_strided_slice %250 {offsets = [0, 32], sizes = [1, 32], strides = [1, 1]} : vector<1x96xf32> to vector<1x32xf32>
    %255 = vector.extract_strided_slice %250 {offsets = [0, 64], sizes = [1, 32], strides = [1, 1]} : vector<1x96xf32> to vector<1x32xf32>
    %256 = arith.mulf %254, %222 : vector<1x32xf32>
    %257 = arith.mulf %253, %252 : vector<1x32xf32>
    %258 = arith.addf %256, %257 : vector<1x32xf32>
    %259 = math.tanh %258 : vector<1x32xf32>
    %260 = arith.mulf %255, %259 : vector<1x32xf32>
    %c6_i32_30 = arith.constant 6 : i32
    %261 = vector.broadcast %c6_i32_30 : i32 to vector<8x1xi32>
    %262 = arith.cmpi eq, %22, %261 : vector<8x1xi32>
    %263 = vector.extract_strided_slice %260 {offsets = [0, 0], sizes = [1, 16], strides = [1, 1]} : vector<1x32xf32> to vector<1x16xf32>
    %264 = vector.shape_cast %262 : vector<8x1xi1> to vector<8x1xi1>
    %265 = vector.broadcast %264 : vector<8x1xi1> to vector<8x16xi1>
    %266 = vector.shape_cast %263 : vector<1x16xf32> to vector<1x16xf32>
    %267 = vector.broadcast %266 : vector<1x16xf32> to vector<8x16xf32>
    %268 = arith.select %265, %267, %232 : vector<8x16xi1>, vector<8x16xf32>
    %c1_i32_31 = arith.constant 1 : i32
    %269 = vector.broadcast %c1_i32_31 : i32 to vector<8x1xi32>
    %270 = arith.cmpi eq, %22, %269 : vector<8x1xi32>
    %271 = vector.extract_strided_slice %260 {offsets = [0, 16], sizes = [1, 16], strides = [1, 1]} : vector<1x32xf32> to vector<1x16xf32>
    %272 = vector.shape_cast %270 : vector<8x1xi1> to vector<8x1xi1>
    %273 = vector.broadcast %272 : vector<8x1xi1> to vector<8x16xi1>
    %274 = vector.shape_cast %271 : vector<1x16xf32> to vector<1x16xf32>
    %275 = vector.broadcast %274 : vector<1x16xf32> to vector<8x16xf32>
    %276 = arith.select %273, %275, %240 : vector<8x16xi1>, vector<8x16xf32>
    %277 = vector.extract_strided_slice %21 {offsets = [7, 0], sizes = [1, 128], strides = [1, 1]} : vector<8x128xf32> to vector<1x128xf32>
    %278 = arith.truncf %260 : vector<1x32xf32> to vector<1x32xbf16>
    %cst_32 = arith.constant dense<0.000000e+00> : vector<1x128xf32>
    %279 = tpu.matmul %278, %3, %cst_32 {dimension_numbers = #tpu.dot_dimension_numbers<[1], [0], [0], [1], [0, 0, 1, 1], [], []>} : vector<1x32xbf16>, vector<32x128xbf16>, vector<1x128xf32> -> vector<1x128xf32>
    %280 = arith.addf %277, %279 : vector<1x128xf32>
    %281 = vector.extract_strided_slice %280 {offsets = [0, 0], sizes = [1, 96], strides = [1, 1]} : vector<1x128xf32> to vector<1x96xf32>
    %282 = arith.negf %281 : vector<1x96xf32>
    %283 = math.exp %282 : vector<1x96xf32>
    %cst_33 = arith.constant 1.000000e+00 : f32
    %284 = vector.broadcast %cst_33 : f32 to vector<1x96xf32>
    %285 = arith.addf %284, %283 : vector<1x96xf32>
    %286 = arith.divf %284, %285 : vector<1x96xf32>
    %287 = vector.extract_strided_slice %280 {offsets = [0, 96], sizes = [1, 32], strides = [1, 1]} : vector<1x128xf32> to vector<1x32xf32>
    %288 = math.tanh %287 : vector<1x32xf32>
    %289 = vector.extract_strided_slice %286 {offsets = [0, 0], sizes = [1, 32], strides = [1, 1]} : vector<1x96xf32> to vector<1x32xf32>
    %290 = vector.extract_strided_slice %286 {offsets = [0, 32], sizes = [1, 32], strides = [1, 1]} : vector<1x96xf32> to vector<1x32xf32>
    %291 = vector.extract_strided_slice %286 {offsets = [0, 64], sizes = [1, 32], strides = [1, 1]} : vector<1x96xf32> to vector<1x32xf32>
    %292 = arith.mulf %290, %258 : vector<1x32xf32>
    %293 = arith.mulf %289, %288 : vector<1x32xf32>
    %294 = arith.addf %292, %293 : vector<1x32xf32>
    %295 = math.tanh %294 : vector<1x32xf32>
    %296 = arith.mulf %291, %295 : vector<1x32xf32>
    %c7_i32_34 = arith.constant 7 : i32
    %297 = vector.broadcast %c7_i32_34 : i32 to vector<8x1xi32>
    %298 = arith.cmpi eq, %22, %297 : vector<8x1xi32>
    %299 = vector.extract_strided_slice %296 {offsets = [0, 0], sizes = [1, 16], strides = [1, 1]} : vector<1x32xf32> to vector<1x16xf32>
    %300 = vector.shape_cast %298 : vector<8x1xi1> to vector<8x1xi1>
    %301 = vector.broadcast %300 : vector<8x1xi1> to vector<8x16xi1>
    %302 = vector.shape_cast %299 : vector<1x16xf32> to vector<1x16xf32>
    %303 = vector.broadcast %302 : vector<1x16xf32> to vector<8x16xf32>
    %304 = arith.select %301, %303, %268 : vector<8x16xi1>, vector<8x16xf32>
    %c0_i32_35 = arith.constant 0 : i32
    %305 = vector.broadcast %c0_i32_35 : i32 to vector<8x1xi32>
    %306 = arith.cmpi eq, %22, %305 : vector<8x1xi32>
    %307 = vector.extract_strided_slice %296 {offsets = [0, 16], sizes = [1, 16], strides = [1, 1]} : vector<1x32xf32> to vector<1x16xf32>
    %308 = vector.shape_cast %306 : vector<8x1xi1> to vector<8x1xi1>
    %309 = vector.broadcast %308 : vector<8x1xi1> to vector<8x16xi1>
    %310 = vector.shape_cast %307 : vector<1x16xf32> to vector<1x16xf32>
    %311 = vector.broadcast %310 : vector<1x16xf32> to vector<8x16xf32>
    %312 = arith.select %309, %311, %276 : vector<8x16xi1>, vector<8x16xf32>
    %313 = tpu.concatenate %304, %312 in 1 : vector<8x16xf32>, vector<8x16xf32> -> vector<8x32xf32>
    %314 = arith.truncf %313 : vector<8x32xf32> to vector<8x32xbf16>
    %cst_36 = arith.constant dense<0.000000e+00> : vector<8x128xf32>
    %315 = tpu.matmul %314, %6, %cst_36 {dimension_numbers = #tpu.dot_dimension_numbers<[1], [0], [0], [1], [0, 0, 1, 1], [], []>} : vector<8x32xbf16>, vector<32x128xbf16>, vector<8x128xf32> -> vector<8x128xf32>
    %316 = vector.broadcast %7 : vector<1x128xf32> to vector<8x128xf32>
    %317 = arith.addf %315, %316 : vector<8x128xf32>
    %c0_37 = arith.constant 0 : index
    %c0_38 = arith.constant 0 : index
    %318 = vector.load %arg2[%c0_37, %c0_38] : memref<9x128xf32, #tpu.memory_space<vmem>>, vector<8x128xf32>
    tpu.vector_store %arg2[%c0_37, %c0_38], %317 {strides = array<i32>} : memref<9x128xf32, #tpu.memory_space<vmem>>, vector<8x128xf32>,
    %319 = vector.extract_strided_slice %317 {offsets = [0, 0], sizes = [8, 5], strides = [1, 1]} : vector<8x128xf32> to vector<8x5xf32>
    %320 = tpu.iota {dimensions = array<i32: 0>} : vector<5x1xi32>
    %321 = tpu.iota {dimensions = array<i32: 1>} : vector<1x5xi32>
    %322 = tpu.iota {dimensions = array<i32: 0>} : vector<5x5xi32>
    %323 = tpu.iota {dimensions = array<i32: 1>} : vector<5x5xi32>
    %324 = arith.cmpi eq, %323, %322 : vector<5x5xi32>
    %c3_i32_39 = arith.constant 3 : i32
    %325 = vector.broadcast %c3_i32_39 : i32 to vector<5x1xi32>
    %326 = arith.cmpi eq, %320, %325 : vector<5x1xi32>
    %cst_40 = arith.constant 0.000000e+00 : f32
    %cst_41 = arith.constant -1.000000e+04 : f32
    %327 = vector.broadcast %cst_40 : f32 to vector<5x1xf32>
    %328 = vector.broadcast %cst_41 : f32 to vector<5x1xf32>
    %329 = arith.select %326, %327, %328 : vector<5x1xi1>, vector<5x1xf32>
    %330 = vector.broadcast %329 : vector<5x1xf32> to vector<5x5xf32>
    %331 = arith.addf %330, %9 : vector<5x5xf32>
    %cst_42 = arith.constant dense<0xFF800000> : vector<5xf32>
    %332 = vector.multi_reduction <maximumf>, %331, %cst_42 [0] : vector<5x5xf32> to vector<5xf32>
    %333 = vector.shape_cast %332 : vector<5xf32> to vector<1x5xf32>
    %334 = vector.broadcast %333 : vector<1x5xf32> to vector<5x5xf32>
    %335 = arith.cmpf oeq, %331, %334 : vector<5x5xf32>
    %c5_i32_43 = arith.constant 5 : i32
    %336 = vector.broadcast %c5_i32_43 : i32 to vector<5x5xi32>
    %337 = arith.select %335, %322, %336 : vector<5x5xi1>, vector<5x5xi32>
    %cst_44 = arith.constant dense<2147483647> : vector<5xi32>
    %338 = vector.multi_reduction <minsi>, %337, %cst_44 [0] : vector<5x5xi32> to vector<5xi32>
    %339 = vector.shape_cast %338 : vector<5xi32> to vector<1x5xi32>
    %340 = vector.extract_strided_slice %319 {offsets = [0, 0], sizes = [1, 5], strides = [1, 1]} : vector<8x5xf32> to vector<1x5xf32>
    %341 = arith.addf %333, %340 : vector<1x5xf32>
    %342 = vector.extract_strided_slice %319 {offsets = [1, 0], sizes = [1, 5], strides = [1, 1]} : vector<8x5xf32> to vector<1x5xf32>
    %cst_45 = arith.constant 0.000000e+00 : f32
    %343 = vector.shape_cast %342 : vector<1x5xf32> to vector<1x5xf32>
    %344 = vector.broadcast %343 : vector<1x5xf32> to vector<5x5xf32>
    %345 = vector.broadcast %cst_45 : f32 to vector<5x5xf32>
    %346 = arith.select %324, %344, %345 : vector<5x5xi1>, vector<5x5xf32>
    %cst_46 = arith.constant dense<0.000000e+00> : vector<5xf32>
    %347 = vector.multi_reduction <add>, %346, %cst_46 [1] : vector<5x5xf32> to vector<5xf32>
    %348 = vector.shape_cast %347 : vector<5xf32> to vector<5x1xf32>
    %349 = vector.broadcast %341 : vector<1x5xf32> to vector<5x5xf32>
    %350 = arith.addf %349, %11 : vector<5x5xf32>
    %cst_47 = arith.constant dense<0xFF800000> : vector<5xf32>
    %351 = vector.multi_reduction <maximumf>, %350, %cst_47 [1] : vector<5x5xf32> to vector<5xf32>
    %352 = vector.shape_cast %351 : vector<5xf32> to vector<5x1xf32>
    %353 = vector.broadcast %352 : vector<5x1xf32> to vector<5x5xf32>
    %354 = arith.cmpf oeq, %350, %353 : vector<5x5xf32>
    %c5_i32_48 = arith.constant 5 : i32
    %355 = vector.broadcast %c5_i32_48 : i32 to vector<5x5xi32>
    %356 = arith.select %354, %323, %355 : vector<5x5xi1>, vector<5x5xi32>
    %cst_49 = arith.constant dense<2147483647> : vector<5xi32>
    %357 = vector.multi_reduction <minsi>, %356, %cst_49 [1] : vector<5x5xi32> to vector<5xi32>
    %358 = vector.shape_cast %357 : vector<5xi32> to vector<5x1xi32>
    %359 = arith.addf %352, %348 : vector<5x1xf32>
    %360 = vector.broadcast %359 : vector<5x1xf32> to vector<5x5xf32>
    %361 = arith.addf %360, %9 : vector<5x5xf32>
    %cst_50 = arith.constant dense<0xFF800000> : vector<5xf32>
    %362 = vector.multi_reduction <maximumf>, %361, %cst_50 [0] : vector<5x5xf32> to vector<5xf32>
    %363 = vector.shape_cast %362 : vector<5xf32> to vector<1x5xf32>
    %364 = vector.broadcast %363 : vector<1x5xf32> to vector<5x5xf32>
    %365 = arith.cmpf oeq, %361, %364 : vector<5x5xf32>
    %c5_i32_51 = arith.constant 5 : i32
    %366 = vector.broadcast %c5_i32_51 : i32 to vector<5x5xi32>
    %367 = arith.select %365, %322, %366 : vector<5x5xi1>, vector<5x5xi32>
    %cst_52 = arith.constant dense<2147483647> : vector<5xi32>
    %368 = vector.multi_reduction <minsi>, %367, %cst_52 [0] : vector<5x5xi32> to vector<5xi32>
    %369 = vector.shape_cast %368 : vector<5xi32> to vector<1x5xi32>
    %370 = vector.extract_strided_slice %319 {offsets = [2, 0], sizes = [1, 5], strides = [1, 1]} : vector<8x5xf32> to vector<1x5xf32>
    %371 = arith.addf %363, %370 : vector<1x5xf32>
    %372 = vector.extract_strided_slice %319 {offsets = [3, 0], sizes = [1, 5], strides = [1, 1]} : vector<8x5xf32> to vector<1x5xf32>
    %cst_53 = arith.constant 0.000000e+00 : f32
    %373 = vector.shape_cast %372 : vector<1x5xf32> to vector<1x5xf32>
    %374 = vector.broadcast %373 : vector<1x5xf32> to vector<5x5xf32>
    %375 = vector.broadcast %cst_53 : f32 to vector<5x5xf32>
    %376 = arith.select %324, %374, %375 : vector<5x5xi1>, vector<5x5xf32>
    %cst_54 = arith.constant dense<0.000000e+00> : vector<5xf32>
    %377 = vector.multi_reduction <add>, %376, %cst_54 [1] : vector<5x5xf32> to vector<5xf32>
    %378 = vector.shape_cast %377 : vector<5xf32> to vector<5x1xf32>
    %379 = vector.broadcast %371 : vector<1x5xf32> to vector<5x5xf32>
    %380 = arith.addf %379, %11 : vector<5x5xf32>
    %cst_55 = arith.constant dense<0xFF800000> : vector<5xf32>
    %381 = vector.multi_reduction <maximumf>, %380, %cst_55 [1] : vector<5x5xf32> to vector<5xf32>
    %382 = vector.shape_cast %381 : vector<5xf32> to vector<5x1xf32>
    %383 = vector.broadcast %382 : vector<5x1xf32> to vector<5x5xf32>
    %384 = arith.cmpf oeq, %380, %383 : vector<5x5xf32>
    %c5_i32_56 = arith.constant 5 : i32
    %385 = vector.broadcast %c5_i32_56 : i32 to vector<5x5xi32>
    %386 = arith.select %384, %323, %385 : vector<5x5xi1>, vector<5x5xi32>
    %cst_57 = arith.constant dense<2147483647> : vector<5xi32>
    %387 = vector.multi_reduction <minsi>, %386, %cst_57 [1] : vector<5x5xi32> to vector<5xi32>
    %388 = vector.shape_cast %387 : vector<5xi32> to vector<5x1xi32>
    %389 = arith.addf %382, %378 : vector<5x1xf32>
    %390 = vector.broadcast %389 : vector<5x1xf32> to vector<5x5xf32>
    %391 = arith.addf %390, %9 : vector<5x5xf32>
    %cst_58 = arith.constant dense<0xFF800000> : vector<5xf32>
    %392 = vector.multi_reduction <maximumf>, %391, %cst_58 [0] : vector<5x5xf32> to vector<5xf32>
    %393 = vector.shape_cast %392 : vector<5xf32> to vector<1x5xf32>
    %394 = vector.broadcast %393 : vector<1x5xf32> to vector<5x5xf32>
    %395 = arith.cmpf oeq, %391, %394 : vector<5x5xf32>
    %c5_i32_59 = arith.constant 5 : i32
    %396 = vector.broadcast %c5_i32_59 : i32 to vector<5x5xi32>
    %397 = arith.select %395, %322, %396 : vector<5x5xi1>, vector<5x5xi32>
    %cst_60 = arith.constant dense<2147483647> : vector<5xi32>
    %398 = vector.multi_reduction <minsi>, %397, %cst_60 [0] : vector<5x5xi32> to vector<5xi32>
    %399 = vector.shape_cast %398 : vector<5xi32> to vector<1x5xi32>
    %400 = vector.extract_strided_slice %319 {offsets = [4, 0], sizes = [1, 5], strides = [1, 1]} : vector<8x5xf32> to vector<1x5xf32>
    %401 = arith.addf %393, %400 : vector<1x5xf32>
    %402 = vector.extract_strided_slice %319 {offsets = [5, 0], sizes = [1, 5], strides = [1, 1]} : vector<8x5xf32> to vector<1x5xf32>
    %cst_61 = arith.constant 0.000000e+00 : f32
    %403 = vector.shape_cast %402 : vector<1x5xf32> to vector<1x5xf32>
    %404 = vector.broadcast %403 : vector<1x5xf32> to vector<5x5xf32>
    %405 = vector.broadcast %cst_61 : f32 to vector<5x5xf32>
    %406 = arith.select %324, %404, %405 : vector<5x5xi1>, vector<5x5xf32>
    %cst_62 = arith.constant dense<0.000000e+00> : vector<5xf32>
    %407 = vector.multi_reduction <add>, %406, %cst_62 [1] : vector<5x5xf32> to vector<5xf32>
    %408 = vector.shape_cast %407 : vector<5xf32> to vector<5x1xf32>
    %409 = vector.broadcast %401 : vector<1x5xf32> to vector<5x5xf32>
    %410 = arith.addf %409, %11 : vector<5x5xf32>
    %cst_63 = arith.constant dense<0xFF800000> : vector<5xf32>
    %411 = vector.multi_reduction <maximumf>, %410, %cst_63 [1] : vector<5x5xf32> to vector<5xf32>
    %412 = vector.shape_cast %411 : vector<5xf32> to vector<5x1xf32>
    %413 = vector.broadcast %412 : vector<5x1xf32> to vector<5x5xf32>
    %414 = arith.cmpf oeq, %410, %413 : vector<5x5xf32>
    %c5_i32_64 = arith.constant 5 : i32
    %415 = vector.broadcast %c5_i32_64 : i32 to vector<5x5xi32>
    %416 = arith.select %414, %323, %415 : vector<5x5xi1>, vector<5x5xi32>
    %cst_65 = arith.constant dense<2147483647> : vector<5xi32>
    %417 = vector.multi_reduction <minsi>, %416, %cst_65 [1] : vector<5x5xi32> to vector<5xi32>
    %418 = vector.shape_cast %417 : vector<5xi32> to vector<5x1xi32>
    %419 = arith.addf %412, %408 : vector<5x1xf32>
    %420 = vector.broadcast %419 : vector<5x1xf32> to vector<5x5xf32>
    %421 = arith.addf %420, %9 : vector<5x5xf32>
    %cst_66 = arith.constant dense<0xFF800000> : vector<5xf32>
    %422 = vector.multi_reduction <maximumf>, %421, %cst_66 [0] : vector<5x5xf32> to vector<5xf32>
    %423 = vector.shape_cast %422 : vector<5xf32> to vector<1x5xf32>
    %424 = vector.broadcast %423 : vector<1x5xf32> to vector<5x5xf32>
    %425 = arith.cmpf oeq, %421, %424 : vector<5x5xf32>
    %c5_i32_67 = arith.constant 5 : i32
    %426 = vector.broadcast %c5_i32_67 : i32 to vector<5x5xi32>
    %427 = arith.select %425, %322, %426 : vector<5x5xi1>, vector<5x5xi32>
    %cst_68 = arith.constant dense<2147483647> : vector<5xi32>
    %428 = vector.multi_reduction <minsi>, %427, %cst_68 [0] : vector<5x5xi32> to vector<5xi32>
    %429 = vector.shape_cast %428 : vector<5xi32> to vector<1x5xi32>
    %430 = vector.extract_strided_slice %319 {offsets = [6, 0], sizes = [1, 5], strides = [1, 1]} : vector<8x5xf32> to vector<1x5xf32>
    %431 = arith.addf %423, %430 : vector<1x5xf32>
    %432 = vector.extract_strided_slice %319 {offsets = [7, 0], sizes = [1, 5], strides = [1, 1]} : vector<8x5xf32> to vector<1x5xf32>
    %cst_69 = arith.constant 0.000000e+00 : f32
    %433 = vector.shape_cast %432 : vector<1x5xf32> to vector<1x5xf32>
    %434 = vector.broadcast %433 : vector<1x5xf32> to vector<5x5xf32>
    %435 = vector.broadcast %cst_69 : f32 to vector<5x5xf32>
    %436 = arith.select %324, %434, %435 : vector<5x5xi1>, vector<5x5xf32>
    %cst_70 = arith.constant dense<0.000000e+00> : vector<5xf32>
    %437 = vector.multi_reduction <add>, %436, %cst_70 [1] : vector<5x5xf32> to vector<5xf32>
    %438 = vector.shape_cast %437 : vector<5xf32> to vector<5x1xf32>
    %439 = vector.broadcast %431 : vector<1x5xf32> to vector<5x5xf32>
    %440 = arith.addf %439, %11 : vector<5x5xf32>
    %cst_71 = arith.constant dense<0xFF800000> : vector<5xf32>
    %441 = vector.multi_reduction <maximumf>, %440, %cst_71 [1] : vector<5x5xf32> to vector<5xf32>
    %442 = vector.shape_cast %441 : vector<5xf32> to vector<5x1xf32>
    %443 = vector.broadcast %442 : vector<5x1xf32> to vector<5x5xf32>
    %444 = arith.cmpf oeq, %440, %443 : vector<5x5xf32>
    %c5_i32_72 = arith.constant 5 : i32
    %445 = vector.broadcast %c5_i32_72 : i32 to vector<5x5xi32>
    %446 = arith.select %444, %323, %445 : vector<5x5xi1>, vector<5x5xi32>
    %cst_73 = arith.constant dense<2147483647> : vector<5xi32>
    %447 = vector.multi_reduction <minsi>, %446, %cst_73 [1] : vector<5x5xi32> to vector<5xi32>
    %448 = vector.shape_cast %447 : vector<5xi32> to vector<5x1xi32>
    %449 = arith.addf %442, %438 : vector<5x1xf32>
    %450 = arith.addf %449, %13 : vector<5x1xf32>
    %cst_74 = arith.constant dense<0xFF800000> : vector<1xf32>
    %451 = vector.multi_reduction <maximumf>, %450, %cst_74 [0] : vector<5x1xf32> to vector<1xf32>
    %452 = vector.shape_cast %451 : vector<1xf32> to vector<1x1xf32>
    %453 = vector.broadcast %452 : vector<1x1xf32> to vector<5x1xf32>
    %454 = arith.cmpf oeq, %450, %453 : vector<5x1xf32>
    %c5_i32_75 = arith.constant 5 : i32
    %455 = vector.broadcast %c5_i32_75 : i32 to vector<5x1xi32>
    %456 = arith.select %454, %320, %455 : vector<5x1xi1>, vector<5x1xi32>
    %cst_76 = arith.constant dense<2147483647> : vector<1xi32>
    %457 = vector.multi_reduction <minsi>, %456, %cst_76 [0] : vector<5x1xi32> to vector<1xi32>
    %458 = vector.shape_cast %457 : vector<1xi32> to vector<1x1xi32>
    %459 = vector.shape_cast %452 : vector<1x1xf32> to vector<1x1xf32>
    %460 = vector.broadcast %459 : vector<1x1xf32> to vector<1x128xf32>
    %c8 = arith.constant 8 : index
    %c0_77 = arith.constant 0 : index
    %461 = vector.load %arg2[%c8, %c0_77] : memref<9x128xf32, #tpu.memory_space<vmem>>, vector<1x128xf32>
    tpu.vector_store %arg2[%c8, %c0_77], %460 {strides = array<i32>} : memref<9x128xf32, #tpu.memory_space<vmem>>, vector<1x128xf32>,
    %462 = vector.shape_cast %458 : vector<1x1xi32> to vector<1x1xi32>
    %463 = vector.broadcast %462 : vector<1x1xi32> to vector<1x128xi32>
    %c7 = arith.constant 7 : index
    %c0_78 = arith.constant 0 : index
    %464 = vector.load %arg3[%c7, %c0_78] : memref<9x128xi32, #tpu.memory_space<vmem>>, vector<1x128xi32>
    tpu.vector_store %arg3[%c7, %c0_78], %463 {strides = array<i32>} : memref<9x128xi32, #tpu.memory_space<vmem>>, vector<1x128xi32>,
    %465 = vector.broadcast %458 : vector<1x1xi32> to vector<5x1xi32>
    %466 = arith.cmpi eq, %320, %465 : vector<5x1xi32>
    %c0_i32_79 = arith.constant 0 : i32
    %467 = vector.broadcast %c0_i32_79 : i32 to vector<5x1xi32>
    %468 = arith.select %466, %448, %467 : vector<5x1xi1>, vector<5x1xi32>
    %cst_80 = arith.constant dense<0> : vector<1xi32>
    %469 = vector.multi_reduction <add>, %468, %cst_80 [0] : vector<5x1xi32> to vector<1xi32>
    %470 = vector.shape_cast %469 : vector<1xi32> to vector<1x1xi32>
    %471 = vector.shape_cast %470 : vector<1x1xi32> to vector<1x1xi32>
    %472 = vector.broadcast %471 : vector<1x1xi32> to vector<1x128xi32>
    %c6 = arith.constant 6 : index
    %c0_81 = arith.constant 0 : index
    %473 = vector.load %arg3[%c6, %c0_81] : memref<9x128xi32, #tpu.memory_space<vmem>>, vector<1x128xi32>
    tpu.vector_store %arg3[%c6, %c0_81], %472 {strides = array<i32>} : memref<9x128xi32, #tpu.memory_space<vmem>>, vector<1x128xi32>,
    %474 = vector.broadcast %470 : vector<1x1xi32> to vector<1x5xi32>
    %475 = arith.cmpi eq, %321, %474 : vector<1x5xi32>
    %c0_i32_82 = arith.constant 0 : i32
    %476 = vector.broadcast %c0_i32_82 : i32 to vector<1x5xi32>
    %477 = arith.select %475, %429, %476 : vector<1x5xi1>, vector<1x5xi32>
    %cst_83 = arith.constant dense<0> : vector<1xi32>
    %478 = vector.multi_reduction <add>, %477, %cst_83 [1] : vector<1x5xi32> to vector<1xi32>
    %479 = vector.shape_cast %478 : vector<1xi32> to vector<1x1xi32>
    %480 = vector.shape_cast %479 : vector<1x1xi32> to vector<1x1xi32>
    %481 = vector.broadcast %480 : vector<1x1xi32> to vector<1x128xi32>
    %c5 = arith.constant 5 : index
    %c0_84 = arith.constant 0 : index
    %482 = vector.load %arg3[%c5, %c0_84] : memref<9x128xi32, #tpu.memory_space<vmem>>, vector<1x128xi32>
    tpu.vector_store %arg3[%c5, %c0_84], %481 {strides = array<i32>} : memref<9x128xi32, #tpu.memory_space<vmem>>, vector<1x128xi32>,
    %483 = vector.broadcast %479 : vector<1x1xi32> to vector<5x1xi32>
    %484 = arith.cmpi eq, %320, %483 : vector<5x1xi32>
    %c0_i32_85 = arith.constant 0 : i32
    %485 = vector.broadcast %c0_i32_85 : i32 to vector<5x1xi32>
    %486 = arith.select %484, %418, %485 : vector<5x1xi1>, vector<5x1xi32>
    %cst_86 = arith.constant dense<0> : vector<1xi32>
    %487 = vector.multi_reduction <add>, %486, %cst_86 [0] : vector<5x1xi32> to vector<1xi32>
    %488 = vector.shape_cast %487 : vector<1xi32> to vector<1x1xi32>
    %489 = vector.shape_cast %488 : vector<1x1xi32> to vector<1x1xi32>
    %490 = vector.broadcast %489 : vector<1x1xi32> to vector<1x128xi32>
    %c4 = arith.constant 4 : index
    %c0_87 = arith.constant 0 : index
    %491 = vector.load %arg3[%c4, %c0_87] : memref<9x128xi32, #tpu.memory_space<vmem>>, vector<1x128xi32>
    tpu.vector_store %arg3[%c4, %c0_87], %490 {strides = array<i32>} : memref<9x128xi32, #tpu.memory_space<vmem>>, vector<1x128xi32>,
    %492 = vector.broadcast %488 : vector<1x1xi32> to vector<1x5xi32>
    %493 = arith.cmpi eq, %321, %492 : vector<1x5xi32>
    %c0_i32_88 = arith.constant 0 : i32
    %494 = vector.broadcast %c0_i32_88 : i32 to vector<1x5xi32>
    %495 = arith.select %493, %399, %494 : vector<1x5xi1>, vector<1x5xi32>
    %cst_89 = arith.constant dense<0> : vector<1xi32>
    %496 = vector.multi_reduction <add>, %495, %cst_89 [1] : vector<1x5xi32> to vector<1xi32>
    %497 = vector.shape_cast %496 : vector<1xi32> to vector<1x1xi32>
    %498 = vector.shape_cast %497 : vector<1x1xi32> to vector<1x1xi32>
    %499 = vector.broadcast %498 : vector<1x1xi32> to vector<1x128xi32>
    %c3 = arith.constant 3 : index
    %c0_90 = arith.constant 0 : index
    %500 = vector.load %arg3[%c3, %c0_90] : memref<9x128xi32, #tpu.memory_space<vmem>>, vector<1x128xi32>
    tpu.vector_store %arg3[%c3, %c0_90], %499 {strides = array<i32>} : memref<9x128xi32, #tpu.memory_space<vmem>>, vector<1x128xi32>,
    %501 = vector.broadcast %497 : vector<1x1xi32> to vector<5x1xi32>
    %502 = arith.cmpi eq, %320, %501 : vector<5x1xi32>
    %c0_i32_91 = arith.constant 0 : i32
    %503 = vector.broadcast %c0_i32_91 : i32 to vector<5x1xi32>
    %504 = arith.select %502, %388, %503 : vector<5x1xi1>, vector<5x1xi32>
    %cst_92 = arith.constant dense<0> : vector<1xi32>
    %505 = vector.multi_reduction <add>, %504, %cst_92 [0] : vector<5x1xi32> to vector<1xi32>
    %506 = vector.shape_cast %505 : vector<1xi32> to vector<1x1xi32>
    %507 = vector.shape_cast %506 : vector<1x1xi32> to vector<1x1xi32>
    %508 = vector.broadcast %507 : vector<1x1xi32> to vector<1x128xi32>
    %c2 = arith.constant 2 : index
    %c0_93 = arith.constant 0 : index
    %509 = vector.load %arg3[%c2, %c0_93] : memref<9x128xi32, #tpu.memory_space<vmem>>, vector<1x128xi32>
    tpu.vector_store %arg3[%c2, %c0_93], %508 {strides = array<i32>} : memref<9x128xi32, #tpu.memory_space<vmem>>, vector<1x128xi32>,
    %510 = vector.broadcast %506 : vector<1x1xi32> to vector<1x5xi32>
    %511 = arith.cmpi eq, %321, %510 : vector<1x5xi32>
    %c0_i32_94 = arith.constant 0 : i32
    %512 = vector.broadcast %c0_i32_94 : i32 to vector<1x5xi32>
    %513 = arith.select %511, %369, %512 : vector<1x5xi1>, vector<1x5xi32>
    %cst_95 = arith.constant dense<0> : vector<1xi32>
    %514 = vector.multi_reduction <add>, %513, %cst_95 [1] : vector<1x5xi32> to vector<1xi32>
    %515 = vector.shape_cast %514 : vector<1xi32> to vector<1x1xi32>
    %516 = vector.shape_cast %515 : vector<1x1xi32> to vector<1x1xi32>
    %517 = vector.broadcast %516 : vector<1x1xi32> to vector<1x128xi32>
    %c1 = arith.constant 1 : index
    %c0_96 = arith.constant 0 : index
    %518 = vector.load %arg3[%c1, %c0_96] : memref<9x128xi32, #tpu.memory_space<vmem>>, vector<1x128xi32>
    tpu.vector_store %arg3[%c1, %c0_96], %517 {strides = array<i32>} : memref<9x128xi32, #tpu.memory_space<vmem>>, vector<1x128xi32>,
    %519 = vector.broadcast %515 : vector<1x1xi32> to vector<5x1xi32>
    %520 = arith.cmpi eq, %320, %519 : vector<5x1xi32>
    %c0_i32_97 = arith.constant 0 : i32
    %521 = vector.broadcast %c0_i32_97 : i32 to vector<5x1xi32>
    %522 = arith.select %520, %358, %521 : vector<5x1xi1>, vector<5x1xi32>
    %cst_98 = arith.constant dense<0> : vector<1xi32>
    %523 = vector.multi_reduction <add>, %522, %cst_98 [0] : vector<5x1xi32> to vector<1xi32>
    %524 = vector.shape_cast %523 : vector<1xi32> to vector<1x1xi32>
    %525 = vector.shape_cast %524 : vector<1x1xi32> to vector<1x1xi32>
    %526 = vector.broadcast %525 : vector<1x1xi32> to vector<1x128xi32>
    %c0_99 = arith.constant 0 : index
    %c0_100 = arith.constant 0 : index
    %527 = vector.load %arg3[%c0_99, %c0_100] : memref<9x128xi32, #tpu.memory_space<vmem>>, vector<1x128xi32>
    tpu.vector_store %arg3[%c0_99, %c0_100], %526 {strides = array<i32>} : memref<9x128xi32, #tpu.memory_space<vmem>>, vector<1x128xi32>,
    %528 = vector.broadcast %524 : vector<1x1xi32> to vector<1x5xi32>
    %529 = arith.cmpi eq, %321, %528 : vector<1x5xi32>
    %c0_i32_101 = arith.constant 0 : i32
    %530 = vector.broadcast %c0_i32_101 : i32 to vector<1x5xi32>
    %531 = arith.select %529, %339, %530 : vector<1x5xi1>, vector<1x5xi32>
    %cst_102 = arith.constant dense<0> : vector<1xi32>
    %532 = vector.multi_reduction <add>, %531, %cst_102 [1] : vector<1x5xi32> to vector<1xi32>
    %533 = vector.shape_cast %532 : vector<1xi32> to vector<1x1xi32>
    %534 = vector.shape_cast %533 : vector<1x1xi32> to vector<1x1xi32>
    %535 = vector.broadcast %534 : vector<1x1xi32> to vector<1x128xi32>
    %c8_103 = arith.constant 8 : index
    %c0_104 = arith.constant 0 : index
    %536 = vector.load %arg3[%c8_103, %c0_104] : memref<9x128xi32, #tpu.memory_space<vmem>>, vector<1x128xi32>
    tpu.vector_store %arg3[%c8_103, %c0_104], %535 {strides = array<i32>} : memref<9x128xi32, #tpu.memory_space<vmem>>, vector<1x128xi32>,
    return
  }
}

</mosaic_0001>

<llo_original>
// kernel: tpu_custom_call.1
$region0: #{tpu_custom_call.1}
  #allocation0 [shape = 'u32[]', space=smem, size = 0x4, offset = 0x4, fixed_abs, tag = 'smem constant byte address 0x4 - core index']
  #allocation1 [shape = 'u32[144,128]{1,0:T(1,128)}', space=vmem, size = 0x12000, scoped, tag = 'internal scratch']
  %s0 = inlined_call_operand.hbm [shape: f32[136,128], index: 0, kind: input, shape index: {}]
  %s1 = inlined_call_operand.hbm [shape: f32[8,128], index: 1, kind: input, shape index: {}]
  %s2 = inlined_call_operand.hbm [shape: f32[9,128], index: 2, kind: output, shape index: {0}]
  %s3 = inlined_call_operand.hbm [shape: s32[9,128], index: 3, kind: output, shape index: {1}]
  %4 = xla_tuple %s2, %s3
  %s5 = sld [smem:[#allocation0]]
  $region34: #{tpu_custom_call.1} parent=0
    _
  %s7 = ssub.s32 1, %s5
  %s8 = scalar_select 0, %s7, %s5
  $region1: #{tpu_custom_call.1} parent=0
    #allocation2 [shape = 'u8[69632]{0}', space=vmem, size = 0x11000, scoped, tag = 'input window, operand 0, single buffered']
    #allocation3 [shape = 's32[1]{0}', space=sflag, size = 0x4, scoped, tag = 'scoped memory for tpu_custom_call.1']
    #allocation4 [shape = 's32[1]{0}', space=sflag, size = 0x4, scoped, tag = 'scoped memory for tpu_custom_call.1']
    #allocation5 [shape = 'u8[4096]{0}', space=vmem, size = 0x1000, scoped, tag = 'input window, operand 1, single buffered']
    #allocation6 [shape = 's32[1]{0}', space=sflag, size = 0x4, scoped, tag = 'scoped memory for tpu_custom_call.1']
    #allocation7 [shape = 'u8[8192]{0}', space=vmem, size = 0x2000, scoped, tag = 'output window, operand 0, single buffered']
    #allocation8 [shape = 'u8[8192]{0}', space=vmem, size = 0x2000, scoped, tag = 'output window, operand 1, single buffered']
    #allocation9 [shape = 's32[1]{0}', space=sflag, size = 0x4, scoped, tag = 'scoped memory for tpu_custom_call.1']
    %9 = vsyncpa [#allocation3], 0
    %10 = vsyncpa [#allocation6], 0
    %11 = vsyncpa [#allocation4], 0
    %12 = vsyncpa [#allocation9], 0
    // Predicated region
    $region2: #{tpu_custom_call.1} parent=1 // pred_check
      _
    $region3: #{tpu_custom_call.1} parent=1 // pred_check_branch
      %14 = sbr.rel (0) target = $region5
    $region4: #{tpu_custom_call.1} parent=1 // pred_region
      %s16 = ssub.s32 2176, 2176
      %17 = vsyncadd [#allocation3], %s16
      %s18 = sshll.u32 [#allocation2], 4
      %s19 = int_to_ptr.vmem [resolvable:$true] %s18
      %24 = dma.hbm_to_vmem [thread:$0]  %s0, 2176, %s19, [#allocation3], 128, 128, 8
    $region5: #{tpu_custom_call.1} parent=1 // pred_fallthru
      _
    // Predicated region
    $region6: #{tpu_custom_call.1} parent=1 // pred_check
      _
    $region7: #{tpu_custom_call.1} parent=1 // pred_check_branch
      %26 = sbr.rel (0) target = $region9
    $region8: #{tpu_custom_call.1} parent=1 // pred_region
      %s28 = ssub.s32 128, 128
      %29 = vsyncadd [#allocation6], %s28
      %s31 = sshll.u32 [#allocation5], 4
      %s32 = int_to_ptr.vmem [resolvable:$true] %s31
      %34 = dma.hbm_to_vmem [thread:$0]  %s1, 128, %s32, [#allocation6]
    $region9: #{tpu_custom_call.1} parent=1 // pred_fallthru
      _
    // Predicated region
    $region10: #{tpu_custom_call.1} parent=1 // pred_check
      _
    $region11: #{tpu_custom_call.1} parent=1 // pred_check_branch
      %36 = sbr.rel (0) target = $region13
    $region12: #{tpu_custom_call.1} parent=1 // pred_region
      %37 = dma.done [#allocation3], 2176
    $region13: #{tpu_custom_call.1} parent=1 // pred_fallthru
      _
    // Predicated region
    $region14: #{tpu_custom_call.1} parent=1 // pred_check
      _
    $region15: #{tpu_custom_call.1} parent=1 // pred_check_branch
      %39 = sbr.rel (0) target = $region17
    $region16: #{tpu_custom_call.1} parent=1 // pred_region
      %40 = dma.done [#allocation6], 128
    $region17: #{tpu_custom_call.1} parent=1 // pred_fallthru
      _
    %v42 = vld [vmem:[#allocation2] sm:$0xff]
    %v43 = vld [vmem:[#allocation2 + $0x8] sm:$0xff]
    %v44 = vld [vmem:[#allocation2 + $0x10] sm:$0xff]
    %v45 = vld [vmem:[#allocation2 + $0x18] sm:$0xff]
    %v46 = vpack.c.bf16 %v43, %v42
    %v47 = vpack.c.bf16 %v45, %v44
    %v48 = vld [vmem:[#allocation2 + $0x20] sm:$0xff]
    %v49 = vld [vmem:[#allocation2 + $0x28] sm:$0xff]
    %v50 = vld [vmem:[#allocation2 + $0x30] sm:$0xff]
    %v51 = vld [vmem:[#allocation2 + $0x38] sm:$0xff]
    %v52 = vpack.c.bf16 %v49, %v48
    %v53 = vpack.c.bf16 %v51, %v50
    %v54 = vld [vmem:[#allocation2 + $0x40] sm:$0x1]
    %v55 = vld [vmem:[#allocation2 + $0x48] sm:$0xff]
    %v56 = vld [vmem:[#allocation2 + $0x50] sm:$0xff]
    %v57 = vld [vmem:[#allocation2 + $0x58] sm:$0xff]
    %v58 = vld [vmem:[#allocation2 + $0x60] sm:$0xff]
    %v59 = vpack.c.bf16 %v56, %v55
    %v60 = vpack.c.bf16 %v58, %v57
    %v61 = vld [vmem:[#allocation2 + $0x68] sm:$0x1]
    %v62 = vld [vmem:[#allocation2 + $0x70] sm:$0x1f]
    %v63 = vld [vmem:[#allocation2 + $0x78] sm:$0x1f]
    %v64 = vld [vmem:[#allocation2 + $0x80] sm:$0x1f]
    %v65 = vld [vmem:[#allocation5] sm:$0xff]
    %v66 = vpack.c.bf16 %v65, %v65
    %v67 = vlaneseq
    %v68 = vshrl.u32 %v67, 7
    %v69 = vsub.s32 0, %v68
    %v70 = vrot.slane %v54, %v69
    %vm71 = vcmask 261120
    %v73 = vsel %vm71, %v66, 0
    %75 = vmatprep.subr.bf16.mxu0 0
    %76 = vmatpush1.bf16.msra.mxu0 %v46
    %77 = vmatprep.subr.bf16.mxu0 0
    %78 = vmatpush1.bf16.msra.mxu0 %v47
    %79 = vmatprep.subr.bf16.mxu0 0
    %80 = vmatpush1.bf16.msra.mxu0 0
    %81 = vmatprep.subr.bf16.mxu0 0
    %82 = vmatpush1.bf16.msra.mxu0 0
    %83 = vmatprep.subr.bf16.mxu0 0
    %84 = vmatpush1.bf16.msra.mxu0 0
    %85 = vmatprep.subr.bf16.mxu0 0
    %86 = vmatpush1.bf16.msra.mxu0 0
    %87 = vmatprep.subr.bf16.mxu0 0
    %88 = vmatpush1.bf16.msra.mxu0 0
    %89 = vmatprep.subr.bf16.mxu0 0
    %90 = vmatpush1.bf16.msra.mxu0 0
    %91 = vmatprep.subr.bf16.mxu0 0
    %92 = vmatpush1.bf16.msra.mxu0 0
    %93 = vmatprep.subr.bf16.mxu0 0
    %94 = vmatpush1.bf16.msra.mxu0 0
    %95 = vmatprep.subr.bf16.mxu0 0
    %96 = vmatpush1.bf16.msra.mxu0 0
    %97 = vmatprep.subr.bf16.mxu0 0
    %98 = vmatpush1.bf16.msra.mxu0 0
    %99 = vmatprep.subr.bf16.mxu0 0
    %100 = vmatpush1.bf16.msra.mxu0 0
    %101 = vmatprep.subr.bf16.mxu0 0
    %102 = vmatpush1.bf16.msra.mxu0 0
    %103 = vmatprep.subr.bf16.mxu0 0
    %104 = vmatpush1.bf16.msra.mxu0 0
    %105 = vmatprep.subr.bf16.mxu0 0
    %106 = vmatpush1.bf16.msra.mxu0 0
    %107 = vmatprep.mubr.bf16.mxu0 0
    %108 = vmatmul.mubr.bf16.gmra.mrb[0].mxu0 %v73
    %v109 = vpop.f32.mrb[0].mxu0
    %v110 = vadd.f32 %v70, %v109
    %v111 = vpop.f32.mrb[0].mxu0
    %v112 = vpop.f32.mrb[0].mxu0
    %v113 = vpop.f32.mrb[0].mxu0
    %114 = vdwg.mxu0
    %v115 = vlaneseq
    %v116 = vshrl.u32 %v115, 7
    %118 = vrot.lane.b32.xlu0 %v66, 96
    %v119 = vpop.permute.xlu0 %118
    %v121 = vsel %vm71, %v119, 0
    %123 = vmatprep.subr.bf16.mxu0 0
    %124 = vmatpush1.bf16.msra.mxu0 %v52
    %125 = vmatprep.subr.bf16.mxu0 0
    %126 = vmatpush1.bf16.msra.mxu0 %v53
    %127 = vmatprep.subr.bf16.mxu0 0
    %128 = vmatpush1.bf16.msra.mxu0 0
    %129 = vmatprep.subr.bf16.mxu0 0
    %130 = vmatpush1.bf16.msra.mxu0 0
    %131 = vmatprep.subr.bf16.mxu0 0
    %132 = vmatpush1.bf16.msra.mxu0 0
    %133 = vmatprep.subr.bf16.mxu0 0
    %134 = vmatpush1.bf16.msra.mxu0 0
    %135 = vmatprep.subr.bf16.mxu0 0
    %136 = vmatpush1.bf16.msra.mxu0 0
    %137 = vmatprep.subr.bf16.mxu0 0
    %138 = vmatpush1.bf16.msra.mxu0 0
    %139 = vmatprep.subr.bf16.mxu0 0
    %140 = vmatpush1.bf16.msra.mxu0 0
    %141 = vmatprep.subr.bf16.mxu0 0
    %142 = vmatpush1.bf16.msra.mxu0 0
    %143 = vmatprep.subr.bf16.mxu0 0
    %144 = vmatpush1.bf16.msra.mxu0 0
    %145 = vmatprep.subr.bf16.mxu0 0
    %146 = vmatpush1.bf16.msra.mxu0 0
    %147 = vmatprep.subr.bf16.mxu0 0
    %148 = vmatpush1.bf16.msra.mxu0 0
    %149 = vmatprep.subr.bf16.mxu0 0
    %150 = vmatpush1.bf16.msra.mxu0 0
    %151 = vmatprep.subr.bf16.mxu0 0
    %152 = vmatpush1.bf16.msra.mxu0 0
    %153 = vmatprep.subr.bf16.mxu0 0
    %154 = vmatpush1.bf16.msra.mxu0 0
    %155 = vmatprep.mubr.bf16.mxu0 0
    %156 = vmatmul.mubr.bf16.gmra.mrb[0].mxu0 %v121
    %v157 = vpop.f32.mrb[0].mxu0
    %v158 = vadd.f32 0.0, %v157
    %v159 = vpop.f32.mrb[0].mxu0
    %v160 = vpop.f32.mrb[0].mxu0
    %v161 = vpop.f32.mrb[0].mxu0
    %162 = vdwg.mxu0
    %v163 = vadd.f32 %v110, %v158
    %v164 = vxor.u32 %v163, 2147483648
    %v165 = vmul.f32 %v164, 1.442695
    %v166 = vpow.pop %v165
    %v167 = vadd.f32 %v166, 1.0
    %v168 = vrcp.pop %v167
    %v169 = vmul.f32 1.0, %v168
    %v170 = vtanh.pop %v163
    %v172 = vrot.slane %v65, 1
    %v174 = vmul.f32 %v169, %v172
    %176 = vrot.lane.b32.xlu0 %v170, 32
    %v177 = vpop.permute.xlu0 %176
    %v179 = vmul.f32 %v169, %v177
    %181 = vrot.lane.b32.xlu0 %v179, 32
    %v182 = vpop.permute.xlu0 %181
    %v184 = vadd.f32 %v174, %v182
    %v185 = vtanh.pop %v184
    %187 = vrot.lane.b32.xlu0 %v185, 32
    %v188 = vpop.permute.xlu0 %187
    %v190 = vmul.f32 %v169, %v188
    %vm191 = vcmp.eq.s32.totalorder %v116, 0
    %v192 = vsel %vm191, 1, 0
    %vm193 = vcmp.eq.s32.totalorder %v192, 1
    %v194 = vlaneseq
    %v195 = vshrl.u32 %v194, 7
    %v196 = vsub.s32 0, %v195
    %v197 = vrot.slane %v190, %v196
    %v198 = vsel %vm193, %v197, 0.0
    %vm199 = vcmp.eq.s32.totalorder %v116, 7
    %v200 = vsel %vm199, 1, 0
    %vm201 = vcmp.eq.s32.totalorder %v200, 1
    %v202 = vsel %vm201, %v197, 0.0
    %v203 = vpack.c.bf16 %v190, %v190
    %205 = vrot.lane.b32.xlu0 %v203, 64
    %v206 = vpop.permute.xlu0 %205
    %v208 = vsel %vm71, %v206, 0
    %210 = vmatprep.subr.bf16.mxu0 0
    %211 = vmatpush1.bf16.msra.mxu0 %v52
    %212 = vmatprep.subr.bf16.mxu0 0
    %213 = vmatpush1.bf16.msra.mxu0 %v53
    %214 = vmatprep.subr.bf16.mxu0 0
    %215 = vmatpush1.bf16.msra.mxu0 0
    %216 = vmatprep.subr.bf16.mxu0 0
    %217 = vmatpush1.bf16.msra.mxu0 0
    %218 = vmatprep.subr.bf16.mxu0 0
    %219 = vmatpush1.bf16.msra.mxu0 0
    %220 = vmatprep.subr.bf16.mxu0 0
    %221 = vmatpush1.bf16.msra.mxu0 0
    %222 = vmatprep.subr.bf16.mxu0 0
    %223 = vmatpush1.bf16.msra.mxu0 0
    %224 = vmatprep.subr.bf16.mxu0 0
    %225 = vmatpush1.bf16.msra.mxu0 0
    %226 = vmatprep.subr.bf16.mxu0 0
    %227 = vmatpush1.bf16.msra.mxu0 0
    %228 = vmatprep.subr.bf16.mxu0 0
    %229 = vmatpush1.bf16.msra.mxu0 0
    %230 = vmatprep.subr.bf16.mxu0 0
    %231 = vmatpush1.bf16.msra.mxu0 0
    %232 = vmatprep.subr.bf16.mxu0 0
    %233 = vmatpush1.bf16.msra.mxu0 0
    %234 = vmatprep.subr.bf16.mxu0 0
    %235 = vmatpush1.bf16.msra.mxu0 0
    %236 = vmatprep.subr.bf16.mxu0 0
    %237 = vmatpush1.bf16.msra.mxu0 0
    %238 = vmatprep.subr.bf16.mxu0 0
    %239 = vmatpush1.bf16.msra.mxu0 0
    %240 = vmatprep.subr.bf16.mxu0 0
    %241 = vmatpush1.bf16.msra.mxu0 0
    %242 = vmatprep.mubr.bf16.mxu0 0
    %243 = vmatmul.mubr.bf16.gmra.mrb[0].mxu0 %v208
    %v244 = vpop.f32.mrb[0].mxu0
    %v245 = vadd.f32 0.0, %v244
    %v246 = vpop.f32.mrb[0].mxu0
    %v247 = vpop.f32.mrb[0].mxu0
    %v248 = vpop.f32.mrb[0].mxu0
    %249 = vdwg.mxu0
    %v251 = vrot.slane %v245, 7
    %v253 = vadd.f32 %v110, %v251
    %v254 = vxor.u32 %v253, 2147483648
    %v255 = vmul.f32 %v254, 1.442695
    %v256 = vpow.pop %v255
    %v257 = vadd.f32 %v256, 1.0
    %v258 = vrcp.pop %v257
    %v259 = vmul.f32 1.0, %v258
    %v260 = vtanh.pop %v253
    %v262 = vrot.slane %v184, 7
    %v264 = vmul.f32 %v259, %v262
    %266 = vrot.lane.b32.xlu0 %v260, 32
    %v267 = vpop.permute.xlu0 %266
    %v269 = vmul.f32 %v259, %v267
    %271 = vrot.lane.b32.xlu0 %v269, 32
    %v272 = vpop.permute.xlu0 %271
    %v274 = vadd.f32 %v264, %v272
    %v275 = vtanh.pop %v274
    %277 = vrot.lane.b32.xlu0 %v275, 32
    %v278 = vpop.permute.xlu0 %277
    %v280 = vmul.f32 %v259, %v278
    %vm281 = vcmp.eq.s32.totalorder %v116, 1
    %v282 = vsel %vm281, 1, 0
    %vm283 = vcmp.eq.s32.totalorder %v282, 1
    %v284 = vlaneseq
    %v285 = vshrl.u32 %v284, 7
    %v286 = vsub.s32 1, %v285
    %v287 = vrot.slane %v280, %v286
    %v288 = vsel %vm283, %v287, %v198
    %vm289 = vcmp.eq.s32.totalorder %v116, 6
    %v290 = vsel %vm289, 1, 0
    %vm291 = vcmp.eq.s32.totalorder %v290, 1
    %v292 = vsel %vm291, %v287, %v202
    %v293 = vpack.c.bf16 %v280, %v280
    %v295 = vshrl.u32 %v293, 16
    %297 = vrot.lane.b32.xlu0 %v295, 64
    %v298 = vpop.permute.xlu0 %297
    %v300 = vsel %vm71, %v298, 0
    %302 = vmatprep.subr.bf16.mxu0 0
    %303 = vmatpush1.bf16.msra.mxu0 %v52
    %304 = vmatprep.subr.bf16.mxu0 0
    %305 = vmatpush1.bf16.msra.mxu0 %v53
    %306 = vmatprep.subr.bf16.mxu0 0
    %307 = vmatpush1.bf16.msra.mxu0 0
    %308 = vmatprep.subr.bf16.mxu0 0
    %309 = vmatpush1.bf16.msra.mxu0 0
    %310 = vmatprep.subr.bf16.mxu0 0
    %311 = vmatpush1.bf16.msra.mxu0 0
    %312 = vmatprep.subr.bf16.mxu0 0
    %313 = vmatpush1.bf16.msra.mxu0 0
    %314 = vmatprep.subr.bf16.mxu0 0
    %315 = vmatpush1.bf16.msra.mxu0 0
    %316 = vmatprep.subr.bf16.mxu0 0
    %317 = vmatpush1.bf16.msra.mxu0 0
    %318 = vmatprep.subr.bf16.mxu0 0
    %319 = vmatpush1.bf16.msra.mxu0 0
    %320 = vmatprep.subr.bf16.mxu0 0
    %321 = vmatpush1.bf16.msra.mxu0 0
    %322 = vmatprep.subr.bf16.mxu0 0
    %323 = vmatpush1.bf16.msra.mxu0 0
    %324 = vmatprep.subr.bf16.mxu0 0
    %325 = vmatpush1.bf16.msra.mxu0 0
    %326 = vmatprep.subr.bf16.mxu0 0
    %327 = vmatpush1.bf16.msra.mxu0 0
    %328 = vmatprep.subr.bf16.mxu0 0
    %329 = vmatpush1.bf16.msra.mxu0 0
    %330 = vmatprep.subr.bf16.mxu0 0
    %331 = vmatpush1.bf16.msra.mxu0 0
    %332 = vmatprep.subr.bf16.mxu0 0
    %333 = vmatpush1.bf16.msra.mxu0 0
    %334 = vmatprep.mubr.bf16.mxu0 0
    %335 = vmatmul.mubr.bf16.gmra.mrb[0].mxu0 %v300
    %v336 = vpop.f32.mrb[0].mxu0
    %v337 = vadd.f32 0.0, %v336
    %v338 = vpop.f32.mrb[0].mxu0
    %v339 = vpop.f32.mrb[0].mxu0
    %v340 = vpop.f32.mrb[0].mxu0
    %341 = vdwg.mxu0
    %v343 = vrot.slane %v337, 6
    %v345 = vadd.f32 %v110, %v343
    %v346 = vxor.u32 %v345, 2147483648
    %v347 = vmul.f32 %v346, 1.442695
    %v348 = vpow.pop %v347
    %v349 = vadd.f32 %v348, 1.0
    %v350 = vrcp.pop %v349
    %v351 = vmul.f32 1.0, %v350
    %v352 = vtanh.pop %v345
    %v354 = vrot.slane %v274, 7
    %v356 = vmul.f32 %v351, %v354
    %358 = vrot.lane.b32.xlu0 %v352, 32
    %v359 = vpop.permute.xlu0 %358
    %v361 = vmul.f32 %v351, %v359
    %363 = vrot.lane.b32.xlu0 %v361, 32
    %v364 = vpop.permute.xlu0 %363
    %v366 = vadd.f32 %v356, %v364
    %v367 = vtanh.pop %v366
    %369 = vrot.lane.b32.xlu0 %v367, 32
    %v370 = vpop.permute.xlu0 %369
    %v372 = vmul.f32 %v351, %v370
    %vm373 = vcmp.eq.s32.totalorder %v116, 2
    %v374 = vsel %vm373, 1, 0
    %vm375 = vcmp.eq.s32.totalorder %v374, 1
    %v376 = vlaneseq
    %v377 = vshrl.u32 %v376, 7
    %v378 = vsub.s32 2, %v377
    %v379 = vrot.slane %v372, %v378
    %v380 = vsel %vm375, %v379, %v288
    %vm381 = vcmp.eq.s32.totalorder %v116, 5
    %v382 = vsel %vm381, 1, 0
    %vm383 = vcmp.eq.s32.totalorder %v382, 1
    %v384 = vsel %vm383, %v379, %v292
    %v385 = vpack.c.bf16 %v372, %v372
    %v387 = vrot.slane %v385, 1
    %388 = vrot.lane.b32.xlu0 %v387, 64
    %v389 = vpop.permute.xlu0 %388
    %v391 = vsel %vm71, %v389, 0
    %393 = vmatprep.subr.bf16.mxu0 0
    %394 = vmatpush1.bf16.msra.mxu0 %v52
    %395 = vmatprep.subr.bf16.mxu0 0
    %396 = vmatpush1.bf16.msra.mxu0 %v53
    %397 = vmatprep.subr.bf16.mxu0 0
    %398 = vmatpush1.bf16.msra.mxu0 0
    %399 = vmatprep.subr.bf16.mxu0 0
    %400 = vmatpush1.bf16.msra.mxu0 0
    %401 = vmatprep.subr.bf16.mxu0 0
    %402 = vmatpush1.bf16.msra.mxu0 0
    %403 = vmatprep.subr.bf16.mxu0 0
    %404 = vmatpush1.bf16.msra.mxu0 0
    %405 = vmatprep.subr.bf16.mxu0 0
    %406 = vmatpush1.bf16.msra.mxu0 0
    %407 = vmatprep.subr.bf16.mxu0 0
    %408 = vmatpush1.bf16.msra.mxu0 0
    %409 = vmatprep.subr.bf16.mxu0 0
    %410 = vmatpush1.bf16.msra.mxu0 0
    %411 = vmatprep.subr.bf16.mxu0 0
    %412 = vmatpush1.bf16.msra.mxu0 0
    %413 = vmatprep.subr.bf16.mxu0 0
    %414 = vmatpush1.bf16.msra.mxu0 0
    %415 = vmatprep.subr.bf16.mxu0 0
    %416 = vmatpush1.bf16.msra.mxu0 0
    %417 = vmatprep.subr.bf16.mxu0 0
    %418 = vmatpush1.bf16.msra.mxu0 0
    %419 = vmatprep.subr.bf16.mxu0 0
    %420 = vmatpush1.bf16.msra.mxu0 0
    %421 = vmatprep.subr.bf16.mxu0 0
    %422 = vmatpush1.bf16.msra.mxu0 0
    %423 = vmatprep.subr.bf16.mxu0 0
    %424 = vmatpush1.bf16.msra.mxu0 0
    %425 = vmatprep.mubr.bf16.mxu0 0
    %426 = vmatmul.mubr.bf16.gmra.mrb[0].mxu0 %v391
    %v427 = vpop.f32.mrb[0].mxu0
    %v428 = vadd.f32 0.0, %v427
    %v429 = vpop.f32.mrb[0].mxu0
    %v430 = vpop.f32.mrb[0].mxu0
    %v431 = vpop.f32.mrb[0].mxu0
    %432 = vdwg.mxu0
    %v434 = vrot.slane %v428, 5
    %v436 = vadd.f32 %v110, %v434
    %v437 = vxor.u32 %v436, 2147483648
    %v438 = vmul.f32 %v437, 1.442695
    %v439 = vpow.pop %v438
    %v440 = vadd.f32 %v439, 1.0
    %v441 = vrcp.pop %v440
    %v442 = vmul.f32 1.0, %v441
    %v443 = vtanh.pop %v436
    %v445 = vrot.slane %v366, 7
    %v447 = vmul.f32 %v442, %v445
    %449 = vrot.lane.b32.xlu0 %v443, 32
    %v450 = vpop.permute.xlu0 %449
    %v452 = vmul.f32 %v442, %v450
    %454 = vrot.lane.b32.xlu0 %v452, 32
    %v455 = vpop.permute.xlu0 %454
    %v457 = vadd.f32 %v447, %v455
    %v458 = vtanh.pop %v457
    %460 = vrot.lane.b32.xlu0 %v458, 32
    %v461 = vpop.permute.xlu0 %460
    %v463 = vmul.f32 %v442, %v461
    %vm464 = vcmp.eq.s32.totalorder %v116, 3
    %v465 = vsel %vm464, 1, 0
    %vm466 = vcmp.eq.s32.totalorder %v465, 1
    %v467 = vlaneseq
    %v468 = vshrl.u32 %v467, 7
    %v469 = vsub.s32 3, %v468
    %v470 = vrot.slane %v463, %v469
    %v471 = vsel %vm466, %v470, %v380
    %vm472 = vcmp.eq.s32.totalorder %v116, 4
    %v473 = vsel %vm472, 1, 0
    %vm474 = vcmp.eq.s32.totalorder %v473, 1
    %v475 = vsel %vm474, %v470, %v384
    %v476 = vpack.c.bf16 %v463, %v463
    %v478 = vshrl.u32 %v476, 16
    %v480 = vrot.slane %v478, 1
    %481 = vrot.lane.b32.xlu0 %v480, 64
    %v482 = vpop.permute.xlu0 %481
    %v484 = vsel %vm71, %v482, 0
    %486 = vmatprep.subr.bf16.mxu0 0
    %487 = vmatpush1.bf16.msra.mxu0 %v52
    %488 = vmatprep.subr.bf16.mxu0 0
    %489 = vmatpush1.bf16.msra.mxu0 %v53
    %490 = vmatprep.subr.bf16.mxu0 0
    %491 = vmatpush1.bf16.msra.mxu0 0
    %492 = vmatprep.subr.bf16.mxu0 0
    %493 = vmatpush1.bf16.msra.mxu0 0
    %494 = vmatprep.subr.bf16.mxu0 0
    %495 = vmatpush1.bf16.msra.mxu0 0
    %496 = vmatprep.subr.bf16.mxu0 0
    %497 = vmatpush1.bf16.msra.mxu0 0
    %498 = vmatprep.subr.bf16.mxu0 0
    %499 = vmatpush1.bf16.msra.mxu0 0
    %500 = vmatprep.subr.bf16.mxu0 0
    %501 = vmatpush1.bf16.msra.mxu0 0
    %502 = vmatprep.subr.bf16.mxu0 0
    %503 = vmatpush1.bf16.msra.mxu0 0
    %504 = vmatprep.subr.bf16.mxu0 0
    %505 = vmatpush1.bf16.msra.mxu0 0
    %506 = vmatprep.subr.bf16.mxu0 0
    %507 = vmatpush1.bf16.msra.mxu0 0
    %508 = vmatprep.subr.bf16.mxu0 0
    %509 = vmatpush1.bf16.msra.mxu0 0
    %510 = vmatprep.subr.bf16.mxu0 0
    %511 = vmatpush1.bf16.msra.mxu0 0
    %512 = vmatprep.subr.bf16.mxu0 0
    %513 = vmatpush1.bf16.msra.mxu0 0
    %514 = vmatprep.subr.bf16.mxu0 0
    %515 = vmatpush1.bf16.msra.mxu0 0
    %516 = vmatprep.subr.bf16.mxu0 0
    %517 = vmatpush1.bf16.msra.mxu0 0
    %518 = vmatprep.mubr.bf16.mxu0 0
    %519 = vmatmul.mubr.bf16.gmra.mrb[0].mxu0 %v484
    %v520 = vpop.f32.mrb[0].mxu0
    %v521 = vadd.f32 0.0, %v520
    %v522 = vpop.f32.mrb[0].mxu0
    %v523 = vpop.f32.mrb[0].mxu0
    %v524 = vpop.f32.mrb[0].mxu0
    %525 = vdwg.mxu0
    %v527 = vrot.slane %v521, 4
    %v529 = vadd.f32 %v110, %v527
    %v530 = vxor.u32 %v529, 2147483648
    %v531 = vmul.f32 %v530, 1.442695
    %v532 = vpow.pop %v531
    %v533 = vadd.f32 %v532, 1.0
    %v534 = vrcp.pop %v533
    %v535 = vmul.f32 1.0, %v534
    %v536 = vtanh.pop %v529
    %v538 = vrot.slane %v457, 7
    %v540 = vmul.f32 %v535, %v538
    %542 = vrot.lane.b32.xlu0 %v536, 32
    %v543 = vpop.permute.xlu0 %542
    %v545 = vmul.f32 %v535, %v543
    %547 = vrot.lane.b32.xlu0 %v545, 32
    %v548 = vpop.permute.xlu0 %547
    %v550 = vadd.f32 %v540, %v548
    %v551 = vtanh.pop %v550
    %553 = vrot.lane.b32.xlu0 %v551, 32
    %v554 = vpop.permute.xlu0 %553
    %v556 = vmul.f32 %v535, %v554
    %v557 = vlaneseq
    %v558 = vshrl.u32 %v557, 7
    %v559 = vsub.s32 4, %v558
    %v560 = vrot.slane %v556, %v559
    %v561 = vsel %vm474, %v560, %v471
    %v562 = vsel %vm466, %v560, %v475
    %v563 = vpack.c.bf16 %v556, %v556
    %v565 = vrot.slane %v563, 2
    %566 = vrot.lane.b32.xlu0 %v565, 64
    %v567 = vpop.permute.xlu0 %566
    %v569 = vsel %vm71, %v567, 0
    %571 = vmatprep.subr.bf16.mxu0 0
    %572 = vmatpush1.bf16.msra.mxu0 %v52
    %573 = vmatprep.subr.bf16.mxu0 0
    %574 = vmatpush1.bf16.msra.mxu0 %v53
    %575 = vmatprep.subr.bf16.mxu0 0
    %576 = vmatpush1.bf16.msra.mxu0 0
    %577 = vmatprep.subr.bf16.mxu0 0
    %578 = vmatpush1.bf16.msra.mxu0 0
    %579 = vmatprep.subr.bf16.mxu0 0
    %580 = vmatpush1.bf16.msra.mxu0 0
    %581 = vmatprep.subr.bf16.mxu0 0
    %582 = vmatpush1.bf16.msra.mxu0 0
    %583 = vmatprep.subr.bf16.mxu0 0
    %584 = vmatpush1.bf16.msra.mxu0 0
    %585 = vmatprep.subr.bf16.mxu0 0
    %586 = vmatpush1.bf16.msra.mxu0 0
    %587 = vmatprep.subr.bf16.mxu0 0
    %588 = vmatpush1.bf16.msra.mxu0 0
    %589 = vmatprep.subr.bf16.mxu0 0
    %590 = vmatpush1.bf16.msra.mxu0 0
    %591 = vmatprep.subr.bf16.mxu0 0
    %592 = vmatpush1.bf16.msra.mxu0 0
    %593 = vmatprep.subr.bf16.mxu0 0
    %594 = vmatpush1.bf16.msra.mxu0 0
    %595 = vmatprep.subr.bf16.mxu0 0
    %596 = vmatpush1.bf16.msra.mxu0 0
    %597 = vmatprep.subr.bf16.mxu0 0
    %598 = vmatpush1.bf16.msra.mxu0 0
    %599 = vmatprep.subr.bf16.mxu0 0
    %600 = vmatpush1.bf16.msra.mxu0 0
    %601 = vmatprep.subr.bf16.mxu0 0
    %602 = vmatpush1.bf16.msra.mxu0 0
    %603 = vmatprep.mubr.bf16.mxu0 0
    %604 = vmatmul.mubr.bf16.gmra.mrb[0].mxu0 %v569
    %v605 = vpop.f32.mrb[0].mxu0
    %v606 = vadd.f32 0.0, %v605
    %v607 = vpop.f32.mrb[0].mxu0
    %v608 = vpop.f32.mrb[0].mxu0
    %v609 = vpop.f32.mrb[0].mxu0
    %610 = vdwg.mxu0
    %v612 = vrot.slane %v606, 3
    %v614 = vadd.f32 %v110, %v612
    %v615 = vxor.u32 %v614, 2147483648
    %v616 = vmul.f32 %v615, 1.442695
    %v617 = vpow.pop %v616
    %v618 = vadd.f32 %v617, 1.0
    %v619 = vrcp.pop %v618
    %v620 = vmul.f32 1.0, %v619
    %v621 = vtanh.pop %v614
    %v623 = vrot.slane %v550, 7
    %v625 = vmul.f32 %v620, %v623
    %627 = vrot.lane.b32.xlu0 %v621, 32
    %v628 = vpop.permute.xlu0 %627
    %v630 = vmul.f32 %v620, %v628
    %632 = vrot.lane.b32.xlu0 %v630, 32
    %v633 = vpop.permute.xlu0 %632
    %v635 = vadd.f32 %v625, %v633
    %v636 = vtanh.pop %v635
    %638 = vrot.lane.b32.xlu0 %v636, 32
    %v639 = vpop.permute.xlu0 %638
    %v641 = vmul.f32 %v620, %v639
    %v642 = vlaneseq
    %v643 = vshrl.u32 %v642, 7
    %v644 = vsub.s32 5, %v643
    %v645 = vrot.slane %v641, %v644
    %v646 = vsel %vm383, %v645, %v561
    %v647 = vsel %vm375, %v645, %v562
    %v648 = vpack.c.bf16 %v641, %v641
    %v650 = vshrl.u32 %v648, 16
    %v652 = vrot.slane %v650, 2
    %653 = vrot.lane.b32.xlu0 %v652, 64
    %v654 = vpop.permute.xlu0 %653
    %v656 = vsel %vm71, %v654, 0
    %658 = vmatprep.subr.bf16.mxu0 0
    %659 = vmatpush1.bf16.msra.mxu0 %v52
    %660 = vmatprep.subr.bf16.mxu0 0
    %661 = vmatpush1.bf16.msra.mxu0 %v53
    %662 = vmatprep.subr.bf16.mxu0 0
    %663 = vmatpush1.bf16.msra.mxu0 0
    %664 = vmatprep.subr.bf16.mxu0 0
    %665 = vmatpush1.bf16.msra.mxu0 0
    %666 = vmatprep.subr.bf16.mxu0 0
    %667 = vmatpush1.bf16.msra.mxu0 0
    %668 = vmatprep.subr.bf16.mxu0 0
    %669 = vmatpush1.bf16.msra.mxu0 0
    %670 = vmatprep.subr.bf16.mxu0 0
    %671 = vmatpush1.bf16.msra.mxu0 0
    %672 = vmatprep.subr.bf16.mxu0 0
    %673 = vmatpush1.bf16.msra.mxu0 0
    %674 = vmatprep.subr.bf16.mxu0 0
    %675 = vmatpush1.bf16.msra.mxu0 0
    %676 = vmatprep.subr.bf16.mxu0 0
    %677 = vmatpush1.bf16.msra.mxu0 0
    %678 = vmatprep.subr.bf16.mxu0 0
    %679 = vmatpush1.bf16.msra.mxu0 0
    %680 = vmatprep.subr.bf16.mxu0 0
    %681 = vmatpush1.bf16.msra.mxu0 0
    %682 = vmatprep.subr.bf16.mxu0 0
    %683 = vmatpush1.bf16.msra.mxu0 0
    %684 = vmatprep.subr.bf16.mxu0 0
    %685 = vmatpush1.bf16.msra.mxu0 0
    %686 = vmatprep.subr.bf16.mxu0 0
    %687 = vmatpush1.bf16.msra.mxu0 0
    %688 = vmatprep.subr.bf16.mxu0 0
    %689 = vmatpush1.bf16.msra.mxu0 0
    %690 = vmatprep.mubr.bf16.mxu0 0
    %691 = vmatmul.mubr.bf16.gmra.mrb[0].mxu0 %v656
    %v692 = vpop.f32.mrb[0].mxu0
    %v693 = vadd.f32 0.0, %v692
    %v694 = vpop.f32.mrb[0].mxu0
    %v695 = vpop.f32.mrb[0].mxu0
    %v696 = vpop.f32.mrb[0].mxu0
    %697 = vdwg.mxu0
    %v699 = vrot.slane %v693, 2
    %v701 = vadd.f32 %v110, %v699
    %v702 = vxor.u32 %v701, 2147483648
    %v703 = vmul.f32 %v702, 1.442695
    %v704 = vpow.pop %v703
    %v705 = vadd.f32 %v704, 1.0
    %v706 = vrcp.pop %v705
    %v707 = vmul.f32 1.0, %v706
    %v708 = vtanh.pop %v701
    %v710 = vrot.slane %v635, 7
    %v712 = vmul.f32 %v707, %v710
    %714 = vrot.lane.b32.xlu0 %v708, 32
    %v715 = vpop.permute.xlu0 %714
    %v717 = vmul.f32 %v707, %v715
    %719 = vrot.lane.b32.xlu0 %v717, 32
    %v720 = vpop.permute.xlu0 %719
    %v722 = vadd.f32 %v712, %v720
    %v723 = vtanh.pop %v722
    %725 = vrot.lane.b32.xlu0 %v723, 32
    %v726 = vpop.permute.xlu0 %725
    %v728 = vmul.f32 %v707, %v726
    %v729 = vlaneseq
    %v730 = vshrl.u32 %v729, 7
    %v731 = vsub.s32 6, %v730
    %v732 = vrot.slane %v728, %v731
    %v733 = vsel %vm291, %v732, %v646
    %v734 = vsel %vm283, %v732, %v647
    %v735 = vpack.c.bf16 %v728, %v728
    %v737 = vrot.slane %v735, 3
    %738 = vrot.lane.b32.xlu0 %v737, 64
    %v739 = vpop.permute.xlu0 %738
    %v741 = vsel %vm71, %v739, 0
    %743 = vmatprep.subr.bf16.mxu0 0
    %744 = vmatpush1.bf16.msra.mxu0 %v52
    %745 = vmatprep.subr.bf16.mxu0 0
    %746 = vmatpush1.bf16.msra.mxu0 %v53
    %747 = vmatprep.subr.bf16.mxu0 0
    %748 = vmatpush1.bf16.msra.mxu0 0
    %749 = vmatprep.subr.bf16.mxu0 0
    %750 = vmatpush1.bf16.msra.mxu0 0
    %751 = vmatprep.subr.bf16.mxu0 0
    %752 = vmatpush1.bf16.msra.mxu0 0
    %753 = vmatprep.subr.bf16.mxu0 0
    %754 = vmatpush1.bf16.msra.mxu0 0
    %755 = vmatprep.subr.bf16.mxu0 0
    %756 = vmatpush1.bf16.msra.mxu0 0
    %757 = vmatprep.subr.bf16.mxu0 0
    %758 = vmatpush1.bf16.msra.mxu0 0
    %759 = vmatprep.subr.bf16.mxu0 0
    %760 = vmatpush1.bf16.msra.mxu0 0
    %761 = vmatprep.subr.bf16.mxu0 0
    %762 = vmatpush1.bf16.msra.mxu0 0
    %763 = vmatprep.subr.bf16.mxu0 0
    %764 = vmatpush1.bf16.msra.mxu0 0
    %765 = vmatprep.subr.bf16.mxu0 0
    %766 = vmatpush1.bf16.msra.mxu0 0
    %767 = vmatprep.subr.bf16.mxu0 0
    %768 = vmatpush1.bf16.msra.mxu0 0
    %769 = vmatprep.subr.bf16.mxu0 0
    %770 = vmatpush1.bf16.msra.mxu0 0
    %771 = vmatprep.subr.bf16.mxu0 0
    %772 = vmatpush1.bf16.msra.mxu0 0
    %773 = vmatprep.subr.bf16.mxu0 0
    %774 = vmatpush1.bf16.msra.mxu0 0
    %775 = vmatprep.mubr.bf16.mxu0 0
    %776 = vmatmul.mubr.bf16.gmra.mrb[0].mxu0 %v741
    %v777 = vpop.f32.mrb[0].mxu0
    %v778 = vadd.f32 0.0, %v777
    %v779 = vpop.f32.mrb[0].mxu0
    %v780 = vpop.f32.mrb[0].mxu0
    %v781 = vpop.f32.mrb[0].mxu0
    %782 = vdwg.mxu0
    %v784 = vrot.slane %v778, 1
    %v786 = vadd.f32 %v110, %v784
    %v787 = vxor.u32 %v786, 2147483648
    %v788 = vmul.f32 %v787, 1.442695
    %v789 = vpow.pop %v788
    %v790 = vadd.f32 %v789, 1.0
    %v791 = vrcp.pop %v790
    %v792 = vmul.f32 1.0, %v791
    %v793 = vtanh.pop %v786
    %v795 = vrot.slane %v722, 7
    %v797 = vmul.f32 %v792, %v795
    %799 = vrot.lane.b32.xlu0 %v793, 32
    %v800 = vpop.permute.xlu0 %799
    %v802 = vmul.f32 %v792, %v800
    %804 = vrot.lane.b32.xlu0 %v802, 32
    %v805 = vpop.permute.xlu0 %804
    %v807 = vadd.f32 %v797, %v805
    %v808 = vtanh.pop %v807
    %810 = vrot.lane.b32.xlu0 %v808, 32
    %v811 = vpop.permute.xlu0 %810
    %v813 = vmul.f32 %v792, %v811
    %v814 = vlaneseq
    %v815 = vshrl.u32 %v814, 7
    %v816 = vsub.s32 7, %v815
    %v817 = vrot.slane %v813, %v816
    %v818 = vsel %vm201, %v817, %v733
    %v819 = vsel %vm193, %v817, %v734
    %821 = vrot.lane.b32.xlu0 %v818, 64
    %v822 = vpop.permute.xlu0 %821
    %825 = vrot.lane.b32.xlu0 %v819, 64
    %v826 = vpop.permute.xlu0 %825
    %vm828 = vcmask 130048
    %v829 = vsel %vm828, %v822, %v826
    %v830 = vpack.c.bf16 %v829, %v829
    %v831 = vlaneseq
    %v832 = vshrl.u32 %v831, 7
    %v833 = vsub.s32 0, %v832
    %v834 = vrot.slane %v61, %v833
    %v836 = vsel %vm71, %v830, 0
    %838 = vmatprep.subr.bf16.mxu0 0
    %839 = vmatpush1.bf16.msra.mxu0 %v59
    %840 = vmatprep.subr.bf16.mxu0 0
    %841 = vmatpush1.bf16.msra.mxu0 %v60
    %842 = vmatprep.subr.bf16.mxu0 0
    %843 = vmatpush1.bf16.msra.mxu0 0
    %844 = vmatprep.subr.bf16.mxu0 0
    %845 = vmatpush1.bf16.msra.mxu0 0
    %846 = vmatprep.subr.bf16.mxu0 0
    %847 = vmatpush1.bf16.msra.mxu0 0
    %848 = vmatprep.subr.bf16.mxu0 0
    %849 = vmatpush1.bf16.msra.mxu0 0
    %850 = vmatprep.subr.bf16.mxu0 0
    %851 = vmatpush1.bf16.msra.mxu0 0
    %852 = vmatprep.subr.bf16.mxu0 0
    %853 = vmatpush1.bf16.msra.mxu0 0
    %854 = vmatprep.subr.bf16.mxu0 0
    %855 = vmatpush1.bf16.msra.mxu0 0
    %856 = vmatprep.subr.bf16.mxu0 0
    %857 = vmatpush1.bf16.msra.mxu0 0
    %858 = vmatprep.subr.bf16.mxu0 0
    %859 = vmatpush1.bf16.msra.mxu0 0
    %860 = vmatprep.subr.bf16.mxu0 0
    %861 = vmatpush1.bf16.msra.mxu0 0
    %862 = vmatprep.subr.bf16.mxu0 0
    %863 = vmatpush1.bf16.msra.mxu0 0
    %864 = vmatprep.subr.bf16.mxu0 0
    %865 = vmatpush1.bf16.msra.mxu0 0
    %866 = vmatprep.subr.bf16.mxu0 0
    %867 = vmatpush1.bf16.msra.mxu0 0
    %868 = vmatprep.subr.bf16.mxu0 0
    %869 = vmatpush1.bf16.msra.mxu0 0
    %870 = vmatprep.mubr.bf16.mxu0 0
    %871 = vmatmul.mubr.bf16.gmra.mrb[0].mxu0 %v836
    %v872 = vpop.f32.mrb[0].mxu0
    %v873 = vadd.f32 %v834, %v872
    %v874 = vpop.f32.mrb[0].mxu0
    %v875 = vpop.f32.mrb[0].mxu0
    %v876 = vpop.f32.mrb[0].mxu0
    %877 = vdwg.mxu0
    %878 = vst [vmem:[#allocation7] sm:$0xff] %v873
    %v879 = vlaneseq
    %v880 = vand.u32 %v879, 127
    %vm881 = vcmp.eq.s32.totalorder %v880, %v116
    %v882 = vsel %vm464, 0.0, -10000.0
    %v883 = vadd.f32 %v882, %v62
    %vm884 = vcmask 36864
    %v885 = vsel %vm884, %v883, -inf
    %v886 = vrot.slane %v885, 4
    %v887 = vmax.f32 %v885, %v886
    %v888 = vrot.slane %v887, 2
    %v889 = vmax.f32 %v887, %v888
    %v890 = vrot.slane %v889, 1
    %v891 = vmax.f32 %v889, %v890
    %vm892 = vcmp.eq.f32.partialorder %v883, %v891
    %v893 = vsel %vm892, %v116, 5
    %v894 = vsel %vm884, %v893, 2147483647
    %v895 = vrot.slane %v894, 4
    %vm896 = vcmp.lt.s32.totalorder %v894, %v895
    %v897 = vsel %vm896, %v894, %v895
    %v898 = vrot.slane %v897, 2
    %vm899 = vcmp.lt.s32.totalorder %v897, %v898
    %v900 = vsel %vm899, %v897, %v898
    %v901 = vrot.slane %v900, 1
    %vm902 = vcmp.lt.s32.totalorder %v900, %v901
    %v903 = vsel %vm902, %v900, %v901
    %v904 = vadd.f32 %v891, %v873
    %v905 = vlaneseq
    %v906 = vshrl.u32 %v905, 7
    %v907 = vsub.s32 1, %v906
    %v908 = vrot.slane %v873, %v907
    %v909 = vsel %vm881, %v908, 0.0
    %v910 = vsel %vm884, %v909, 0.0
    %911 = vadd.xlane.f32.xlu0 %v910
    %v912 = vpop.xlane.xlu0 %911
    %v913 = vlaneseq
    %v914 = vshrl.u32 %v913, 7
    %v915 = vsub.s32 0, %v914
    %v916 = vrot.slane %v904, %v915
    %v917 = vadd.f32 %v916, %v63
    %v918 = vsel %vm884, %v917, -inf
    %919 = vmax.xlane.f32.xlu0 %v918
    %v920 = vpop.xlane.xlu0 %919
    %vm921 = vcmp.eq.f32.partialorder %v917, %v920
    %v922 = vsel %vm921, %v880, 5
    %v923 = vsel %vm884, %v922, 2147483647
    %v924 = vand.u32 %v923, 65535
    %v925 = vshra.s32 %v923, 16
    %v926 = vcvt.s32.f32 %v924
    %v927 = vcvt.s32.f32 %v925
    %928 = vmin.xlane.f32.xlu0 %v927
    %v929 = vpop.xlane.xlu0 %928
    %vm930 = vcmp.eq.f32.partialorder %v927, %v929
    %v931 = vsel %vm930, %v926, inf
    %932 = vmin.xlane.f32.xlu0 %v931
    %v933 = vpop.xlane.xlu0 %932
    %v934 = vcvt.f32.s32 %v933
    %v935 = vcvt.f32.s32 %v929
    %v936 = vshll.u32 %v935, 16
    %v937 = vadd.s32 %v936, %v934
    %v938 = vadd.f32 %v920, %v912
    %v939 = vadd.f32 %v938, %v62
    %v940 = vsel %vm884, %v939, -inf
    %v941 = vrot.slane %v940, 4
    %v942 = vmax.f32 %v940, %v941
    %v943 = vrot.slane %v942, 2
    %v944 = vmax.f32 %v942, %v943
    %v945 = vrot.slane %v944, 1
    %v946 = vmax.f32 %v944, %v945
    %vm947 = vcmp.eq.f32.partialorder %v939, %v946
    %v948 = vsel %vm947, %v116, 5
    %v949 = vsel %vm884, %v948, 2147483647
    %v950 = vrot.slane %v949, 4
    %vm951 = vcmp.lt.s32.totalorder %v949, %v950
    %v952 = vsel %vm951, %v949, %v950
    %v953 = vrot.slane %v952, 2
    %vm954 = vcmp.lt.s32.totalorder %v952, %v953
    %v955 = vsel %vm954, %v952, %v953
    %v956 = vrot.slane %v955, 1
    %vm957 = vcmp.lt.s32.totalorder %v955, %v956
    %v958 = vsel %vm957, %v955, %v956
    %v959 = vadd.f32 %v946, %v873
    %v960 = vlaneseq
    %v961 = vshrl.u32 %v960, 7
    %v962 = vsub.s32 3, %v961
    %v963 = vrot.slane %v873, %v962
    %v964 = vsel %vm881, %v963, 0.0
    %v965 = vsel %vm884, %v964, 0.0
    %966 = vadd.xlane.f32.xlu0 %v965
    %v967 = vpop.xlane.xlu0 %966
    %v968 = vlaneseq
    %v969 = vshrl.u32 %v968, 7
    %v970 = vsub.s32 2, %v969
    %v971 = vrot.slane %v959, %v970
    %v972 = vadd.f32 %v971, %v63
    %v973 = vsel %vm884, %v972, -inf
    %974 = vmax.xlane.f32.xlu0 %v973
    %v975 = vpop.xlane.xlu0 %974
    %vm976 = vcmp.eq.f32.partialorder %v972, %v975
    %v977 = vsel %vm976, %v880, 5
    %v978 = vsel %vm884, %v977, 2147483647
    %v979 = vand.u32 %v978, 65535
    %v980 = vshra.s32 %v978, 16
    %v981 = vcvt.s32.f32 %v979
    %v982 = vcvt.s32.f32 %v980
    %983 = vmin.xlane.f32.xlu0 %v982
    %v984 = vpop.xlane.xlu0 %983
    %vm985 = vcmp.eq.f32.partialorder %v982, %v984
    %v986 = vsel %vm985, %v981, inf
    %987 = vmin.xlane.f32.xlu0 %v986
    %v988 = vpop.xlane.xlu0 %987
    %v989 = vcvt.f32.s32 %v988
    %v990 = vcvt.f32.s32 %v984
    %v991 = vshll.u32 %v990, 16
    %v992 = vadd.s32 %v991, %v989
    %v993 = vadd.f32 %v975, %v967
    %v994 = vadd.f32 %v993, %v62
    %v995 = vsel %vm884, %v994, -inf
    %v996 = vrot.slane %v995, 4
    %v997 = vmax.f32 %v995, %v996
    %v998 = vrot.slane %v997, 2
    %v999 = vmax.f32 %v997, %v998
    %v1000 = vrot.slane %v999, 1
    %v1001 = vmax.f32 %v999, %v1000
    %vm1002 = vcmp.eq.f32.partialorder %v994, %v1001
    %v1003 = vsel %vm1002, %v116, 5
    %v1004 = vsel %vm884, %v1003, 2147483647
    %v1005 = vrot.slane %v1004, 4
    %vm1006 = vcmp.lt.s32.totalorder %v1004, %v1005
    %v1007 = vsel %vm1006, %v1004, %v1005
    %v1008 = vrot.slane %v1007, 2
    %vm1009 = vcmp.lt.s32.totalorder %v1007, %v1008
    %v1010 = vsel %vm1009, %v1007, %v1008
    %v1011 = vrot.slane %v1010, 1
    %vm1012 = vcmp.lt.s32.totalorder %v1010, %v1011
    %v1013 = vsel %vm1012, %v1010, %v1011
    %v1014 = vadd.f32 %v1001, %v873
    %v1015 = vlaneseq
    %v1016 = vshrl.u32 %v1015, 7
    %v1017 = vsub.s32 5, %v1016
    %v1018 = vrot.slane %v873, %v1017
    %v1019 = vsel %vm881, %v1018, 0.0
    %v1020 = vsel %vm884, %v1019, 0.0
    %1021 = vadd.xlane.f32.xlu0 %v1020
    %v1022 = vpop.xlane.xlu0 %1021
    %v1023 = vlaneseq
    %v1024 = vshrl.u32 %v1023, 7
    %v1025 = vsub.s32 4, %v1024
    %v1026 = vrot.slane %v1014, %v1025
    %v1027 = vadd.f32 %v1026, %v63
    %v1028 = vsel %vm884, %v1027, -inf
    %1029 = vmax.xlane.f32.xlu0 %v1028
    %v1030 = vpop.xlane.xlu0 %1029
    %vm1031 = vcmp.eq.f32.partialorder %v1027, %v1030
    %v1032 = vsel %vm1031, %v880, 5
    %v1033 = vsel %vm884, %v1032, 2147483647
    %v1034 = vand.u32 %v1033, 65535
    %v1035 = vshra.s32 %v1033, 16
    %v1036 = vcvt.s32.f32 %v1034
    %v1037 = vcvt.s32.f32 %v1035
    %1038 = vmin.xlane.f32.xlu0 %v1037
    %v1039 = vpop.xlane.xlu0 %1038
    %vm1040 = vcmp.eq.f32.partialorder %v1037, %v1039
    %v1041 = vsel %vm1040, %v1036, inf
    %1042 = vmin.xlane.f32.xlu0 %v1041
    %v1043 = vpop.xlane.xlu0 %1042
    %v1044 = vcvt.f32.s32 %v1043
    %v1045 = vcvt.f32.s32 %v1039
    %v1046 = vshll.u32 %v1045, 16
    %v1047 = vadd.s32 %v1046, %v1044
    %v1048 = vadd.f32 %v1030, %v1022
    %v1049 = vadd.f32 %v1048, %v62
    %v1050 = vsel %vm884, %v1049, -inf
    %v1051 = vrot.slane %v1050, 4
    %v1052 = vmax.f32 %v1050, %v1051
    %v1053 = vrot.slane %v1052, 2
    %v1054 = vmax.f32 %v1052, %v1053
    %v1055 = vrot.slane %v1054, 1
    %v1056 = vmax.f32 %v1054, %v1055
    %vm1057 = vcmp.eq.f32.partialorder %v1049, %v1056
    %v1058 = vsel %vm1057, %v116, 5
    %v1059 = vsel %vm884, %v1058, 2147483647
    %v1060 = vrot.slane %v1059, 4
    %vm1061 = vcmp.lt.s32.totalorder %v1059, %v1060
    %v1062 = vsel %vm1061, %v1059, %v1060
    %v1063 = vrot.slane %v1062, 2
    %vm1064 = vcmp.lt.s32.totalorder %v1062, %v1063
    %v1065 = vsel %vm1064, %v1062, %v1063
    %v1066 = vrot.slane %v1065, 1
    %vm1067 = vcmp.lt.s32.totalorder %v1065, %v1066
    %v1068 = vsel %vm1067, %v1065, %v1066
    %v1069 = vadd.f32 %v1056, %v873
    %v1070 = vlaneseq
    %v1071 = vshrl.u32 %v1070, 7
    %v1072 = vsub.s32 7, %v1071
    %v1073 = vrot.slane %v873, %v1072
    %v1074 = vsel %vm881, %v1073, 0.0
    %v1075 = vsel %vm884, %v1074, 0.0
    %1076 = vadd.xlane.f32.xlu0 %v1075
    %v1077 = vpop.xlane.xlu0 %1076
    %v1078 = vlaneseq
    %v1079 = vshrl.u32 %v1078, 7
    %v1080 = vsub.s32 6, %v1079
    %v1081 = vrot.slane %v1069, %v1080
    %v1082 = vadd.f32 %v1081, %v63
    %v1083 = vsel %vm884, %v1082, -inf
    %1084 = vmax.xlane.f32.xlu0 %v1083
    %v1085 = vpop.xlane.xlu0 %1084
    %vm1086 = vcmp.eq.f32.partialorder %v1082, %v1085
    %v1087 = vsel %vm1086, %v880, 5
    %v1088 = vsel %vm884, %v1087, 2147483647
    %v1089 = vand.u32 %v1088, 65535
    %v1090 = vshra.s32 %v1088, 16
    %v1091 = vcvt.s32.f32 %v1089
    %v1092 = vcvt.s32.f32 %v1090
    %1093 = vmin.xlane.f32.xlu0 %v1092
    %v1094 = vpop.xlane.xlu0 %1093
    %vm1095 = vcmp.eq.f32.partialorder %v1092, %v1094
    %v1096 = vsel %vm1095, %v1091, inf
    %1097 = vmin.xlane.f32.xlu0 %v1096
    %v1098 = vpop.xlane.xlu0 %1097
    %v1099 = vcvt.f32.s32 %v1098
    %v1100 = vcvt.f32.s32 %v1094
    %v1101 = vshll.u32 %v1100, 16
    %v1102 = vadd.s32 %v1101, %v1099
    %v1103 = vadd.f32 %v1085, %v1077
    %v1104 = vadd.f32 %v1103, %v64
    %vm1105 = vcmask 4096
    %v1106 = vsel %vm1105, %v1104, -inf
    %v1107 = vrot.slane %v1106, 4
    %v1108 = vmax.f32 %v1106, %v1107
    %v1109 = vrot.slane %v1108, 2
    %v1110 = vmax.f32 %v1108, %v1109
    %v1111 = vrot.slane %v1110, 1
    %v1112 = vmax.f32 %v1110, %v1111
    %vm1113 = vcmp.eq.f32.partialorder %v1104, %v1112
    %v1114 = vsel %vm1113, %v116, 5
    %v1115 = vsel %vm1105, %v1114, 2147483647
    %v1116 = vrot.slane %v1115, 4
    %vm1117 = vcmp.lt.s32.totalorder %v1115, %v1116
    %v1118 = vsel %vm1117, %v1115, %v1116
    %v1119 = vrot.slane %v1118, 2
    %vm1120 = vcmp.lt.s32.totalorder %v1118, %v1119
    %v1121 = vsel %vm1120, %v1118, %v1119
    %v1122 = vrot.slane %v1121, 1
    %vm1123 = vcmp.lt.s32.totalorder %v1121, %v1122
    %v1124 = vsel %vm1123, %v1121, %v1122
    %1126 = vset.pattern.permute.xlu0 0
    %1127 = vperm.xlu0 %1126, %v1112
    %v1128 = vpop.permute.xlu0 %1127
    %1130 = vst [vmem:[#allocation7 + $0x8] sm:$0x1] %v1128
    %1131 = vset.pattern.permute.xlu0 0
    %1132 = vperm.xlu0 %1131, %v1124
    %v1133 = vpop.permute.xlu0 %1132
    %1134 = vst [vmem:[#allocation8 + $0x7] sm:$0x1] %v1133
    %vm1135 = vcmp.eq.s32.totalorder %v116, %v1124
    %v1136 = vsel %vm1135, %v1102, 0
    %v1137 = vsel %vm1105, %v1136, 0
    %v1138 = vrot.slane %v1137, 4
    %v1139 = vadd.s32 %v1137, %v1138
    %v1140 = vrot.slane %v1139, 2
    %v1141 = vadd.s32 %v1139, %v1140
    %v1142 = vrot.slane %v1141, 1
    %v1143 = vadd.s32 %v1141, %v1142
    %1144 = vset.pattern.permute.xlu0 0
    %1145 = vperm.xlu0 %1144, %v1143
    %v1146 = vpop.permute.xlu0 %1145
    %1147 = vst [vmem:[#allocation8 + $0x6] sm:$0x1] %v1146
    %vm1148 = vcmp.eq.s32.totalorder %v880, %v1146
    %v1149 = vsel %vm1148, %v1068, 0
    %vm1150 = vcmask 39936
    %v1151 = vsel %vm1150, %v1149, 0
    %v1152 = vand.u32 %v1151, 65535
    %v1153 = vshrl.u32 %v1151, 16
    %v1154 = vcvt.s32.f32 %v1152
    %v1155 = vcvt.s32.f32 %v1153
    %1156 = vadd.xlane.f32.xlu0 %v1154
    %v1157 = vpop.xlane.xlu0 %1156
    %1158 = vadd.xlane.f32.xlu0 %v1155
    %v1159 = vpop.xlane.xlu0 %1158
    %v1160 = vcvt.f32.s32 %v1157
    %v1161 = vcvt.f32.s32 %v1159
    %v1162 = vshll.u32 %v1161, 16
    %v1163 = vadd.s32 %v1162, %v1160
    %1164 = vst [vmem:[#allocation8 + $0x5] sm:$0x1] %v1163
    %vm1165 = vcmp.eq.s32.totalorder %v116, %v1163
    %v1166 = vsel %vm1165, %v1047, 0
    %vm1167 = vcmask 1044480
    %v1168 = vsel %vm1167, %v1166, 0
    %v1169 = vrot.slane %v1168, 4
    %v1170 = vadd.s32 %v1168, %v1169
    %v1171 = vrot.slane %v1170, 2
    %v1172 = vadd.s32 %v1170, %v1171
    %v1173 = vrot.slane %v1172, 1
    %v1174 = vadd.s32 %v1172, %v1173
    %1175 = vst [vmem:[#allocation8 + $0x4] sm:$0x1] %v1174
    %vm1176 = vcmp.eq.s32.totalorder %v880, %v1174
    %v1177 = vsel %vm1176, %v1013, 0
    %v1178 = vsel %vm1150, %v1177, 0
    %v1179 = vand.u32 %v1178, 65535
    %v1180 = vshrl.u32 %v1178, 16
    %v1181 = vcvt.s32.f32 %v1179
    %v1182 = vcvt.s32.f32 %v1180
    %1183 = vadd.xlane.f32.xlu0 %v1181
    %v1184 = vpop.xlane.xlu0 %1183
    %1185 = vadd.xlane.f32.xlu0 %v1182
    %v1186 = vpop.xlane.xlu0 %1185
    %v1187 = vcvt.f32.s32 %v1184
    %v1188 = vcvt.f32.s32 %v1186
    %v1189 = vshll.u32 %v1188, 16
    %v1190 = vadd.s32 %v1189, %v1187
    %1191 = vst [vmem:[#allocation8 + $0x3] sm:$0x1] %v1190
    %vm1192 = vcmp.eq.s32.totalorder %v116, %v1190
    %v1193 = vsel %vm1192, %v992, 0
    %v1194 = vsel %vm1167, %v1193, 0
    %v1195 = vrot.slane %v1194, 4
    %v1196 = vadd.s32 %v1194, %v1195
    %v1197 = vrot.slane %v1196, 2
    %v1198 = vadd.s32 %v1196, %v1197
    %v1199 = vrot.slane %v1198, 1
    %v1200 = vadd.s32 %v1198, %v1199
    %1201 = vst [vmem:[#allocation8 + $0x2] sm:$0x1] %v1200
    %vm1202 = vcmp.eq.s32.totalorder %v880, %v1200
    %v1203 = vsel %vm1202, %v958, 0
    %v1204 = vsel %vm1150, %v1203, 0
    %v1205 = vand.u32 %v1204, 65535
    %v1206 = vshrl.u32 %v1204, 16
    %v1207 = vcvt.s32.f32 %v1205
    %v1208 = vcvt.s32.f32 %v1206
    %1209 = vadd.xlane.f32.xlu0 %v1207
    %v1210 = vpop.xlane.xlu0 %1209
    %1211 = vadd.xlane.f32.xlu0 %v1208
    %v1212 = vpop.xlane.xlu0 %1211
    %v1213 = vcvt.f32.s32 %v1210
    %v1214 = vcvt.f32.s32 %v1212
    %v1215 = vshll.u32 %v1214, 16
    %v1216 = vadd.s32 %v1215, %v1213
    %1217 = vst [vmem:[#allocation8 + $0x1] sm:$0x1] %v1216
    %vm1218 = vcmp.eq.s32.totalorder %v116, %v1216
    %v1219 = vsel %vm1218, %v937, 0
    %v1220 = vsel %vm1167, %v1219, 0
    %v1221 = vrot.slane %v1220, 4
    %v1222 = vadd.s32 %v1220, %v1221
    %v1223 = vrot.slane %v1222, 2
    %v1224 = vadd.s32 %v1222, %v1223
    %v1225 = vrot.slane %v1224, 1
    %v1226 = vadd.s32 %v1224, %v1225
    %1227 = vst [vmem:[#allocation8] sm:$0x1] %v1226
    %vm1228 = vcmp.eq.s32.totalorder %v880, %v1226
    %v1229 = vsel %vm1228, %v903, 0
    %v1230 = vsel %vm1150, %v1229, 0
    %v1231 = vand.u32 %v1230, 65535
    %v1232 = vshrl.u32 %v1230, 16
    %v1233 = vcvt.s32.f32 %v1231
    %v1234 = vcvt.s32.f32 %v1232
    %1235 = vadd.xlane.f32.xlu0 %v1233
    %v1236 = vpop.xlane.xlu0 %1235
    %1237 = vadd.xlane.f32.xlu0 %v1234
    %v1238 = vpop.xlane.xlu0 %1237
    %v1239 = vcvt.f32.s32 %v1236
    %v1240 = vcvt.f32.s32 %v1238
    %v1241 = vshll.u32 %v1240, 16
    %v1242 = vadd.s32 %v1241, %v1239
    %1243 = vst [vmem:[#allocation8 + $0x8] sm:$0x1] %v1242
    // Predicated region
    $region18: #{tpu_custom_call.1} parent=1 // pred_check
      _
    $region19: #{tpu_custom_call.1} parent=1 // pred_check_branch
      %1245 = sbr.rel (0) target = $region21
    $region20: #{tpu_custom_call.1} parent=1 // pred_region
      %s1247 = ssub.s32 256, 256
      %1248 = vsyncadd [#allocation4], %s1247
      %s1249 = sshll.u32 [#allocation7], 4
      %s1250 = int_to_ptr.vmem [resolvable:$true] %s1249
      %1255 = dma.vmem_to_hbm [thread:$0]  %s1250, 256, %s2, [#allocation4], 128, 128, 8
    $region21: #{tpu_custom_call.1} parent=1 // pred_fallthru
      _
    // Predicated region
    $region22: #{tpu_custom_call.1} parent=1 // pred_check
      _
    $region23: #{tpu_custom_call.1} parent=1 // pred_check_branch
      %1257 = sbr.rel (0) target = $region25
    $region24: #{tpu_custom_call.1} parent=1 // pred_region
      %s1259 = ssub.s32 256, 256
      %1260 = vsyncadd [#allocation9], %s1259
      %s1261 = sshll.u32 [#allocation8], 4
      %s1262 = int_to_ptr.vmem [resolvable:$true] %s1261
      %1267 = dma.vmem_to_hbm [thread:$0]  %s1262, 256, %s3, [#allocation9], 128, 128, 8
    $region25: #{tpu_custom_call.1} parent=1 // pred_fallthru
      _
    // Predicated region
    $region26: #{tpu_custom_call.1} parent=1 // pred_check
      _
    $region27: #{tpu_custom_call.1} parent=1 // pred_check_branch
      %1269 = sbr.rel (0) target = $region29
    $region28: #{tpu_custom_call.1} parent=1 // pred_region
      %1270 = dma.done [#allocation4], 256
    $region29: #{tpu_custom_call.1} parent=1 // pred_fallthru
      _
    // Predicated region
    $region30: #{tpu_custom_call.1} parent=1 // pred_check
      _
    $region31: #{tpu_custom_call.1} parent=1 // pred_check_branch
      %1272 = sbr.rel (0) target = $region33
    $region32: #{tpu_custom_call.1} parent=1 // pred_region
      %1273 = dma.done [#allocation9], 256
    $region33: #{tpu_custom_call.1} parent=1 // pred_fallthru
      _
    %1274 = vsyncpa [#allocation3], 1
    %1275 = vsyncpa [#allocation6], 1
    %1276 = vsyncpa [#allocation4], 1
    %1277 = vsyncpa [#allocation9], 1

</llo_original>
